<compile_context>
chip_gen: v5e
topology: v5e:2x2
jax: 0.10.0
libtpu: 0.0.40
codegen_flags: <defaults>
</compile_context>

<pallas_src>
import functools

import numpy as np
import jax
import jax.numpy as jnp
from jax.experimental import pallas as pl
from jax.experimental.pallas import tpu as pltpu


# ---------------------------------------------------------------------------
# Pallas kernels
# ---------------------------------------------------------------------------
def _conv3x3_kernel(*refs, ci_list, wp, tile, n_tiles, negative_slope):
    """K-stacked 3x3 conv on a channels-first, spatially flattened image.

    refs = (x_0..x_{n-1}, w, bias, out, patch) with
      x_i  : (1, Ci, L_in)        bf16   flattened padded image, L_in = (H+3)*wp
      w    : (Cout, 9*sum(Ci))    bf16   tap-major K-stacked weights
      bias : (Cout, 1)            f32
      out  : (1, Cout, L_out)            L_out = H*wp (multiple of 128)
      patch: (9*sum(Ci), tile)    bf16   VMEM scratch holding the stacked taps
    """
    n_in = len(ci_list)
    x_refs = refs[:n_in]
    w_ref = refs[n_in]
    b_ref = refs[n_in + 1]
    o_ref = refs[n_in + 2]
    patch_ref = refs[n_in + 3]

    bias = b_ref[...]                                   # (Cout, 1) f32
    for j in range(n_tiles):                            # static in-kernel lane tiling
        base = j * tile
        row = 0
        for i, ci in enumerate(ci_list):
            x_ref = x_refs[i]
            for t in range(9):
                off = base + (t // 3) * wp + (t % 3)    # static element offset
                patch_ref[row:row + ci, :] = x_ref[0, :, off:off + tile]
                row += ci
        # single MXU matmul, K = 9*sum(Ci), fp32 accumulation inside the MXU
        acc = jnp.dot(w_ref[...], patch_ref[...],
                      preferred_element_type=jnp.float32)
        acc = acc + bias
        if negative_slope is not None:
            acc = jnp.where(acc >= 0.0, acc, negative_slope * acc)
        o_ref[0, :, base:base + tile] = acc.astype(o_ref.dtype)


def _haar_iwt_kernel(ll_ref, lh_ref, hl_ref, hh_ref, ee_ref, eo_ref, oe_ref, oo_ref):
    ll, lh, hl, hh = ll_ref[...], lh_ref[...], hl_ref[...], hh_ref[...]
    ee_ref[...] = (ll + lh + hl + hh) * 0.5   # even row, even col
    eo_ref[...] = (ll + lh - hl - hh) * 0.5   # even row, odd  col
    oe_ref[...] = (ll - lh + hl - hh) * 0.5   # odd  row, even col
    oo_ref[...] = (ll - lh - hl + hh) * 0.5   # odd  row, odd  col


# ---------------------------------------------------------------------------
# Conv3x3 wrapper (stride 1, pad 1, zero/replicate/reflection padding)
# ---------------------------------------------------------------------------
_PAD_MODE = {"zero": "constant", "replicate": "edge", "reflection": "reflect"}
_MAX_TILE = 1536   # lanes per in-kernel tile (multiple of 128)


def prep_conv(weights, bias):
    """One-time weight preparation (hoisted out of the jitted forward).

    weights: list of (3, 3, Ci, Cout) (channel-split of the full conv weight).
    Returns (w_k, bias2): w_k (Cout, 9*sum(Ci)) bf16, tap-major then channel;
    bias2 (Cout, 1) f32.
    """
    cout = weights[0].shape[-1]
    parts = []
    for w in weights:
        ci = w.shape[2]
        wk = jnp.transpose(w.reshape(9, ci, cout), (2, 0, 1)).reshape(cout, 9 * ci)
        parts.append(wk)
    w_k = jnp.concatenate(parts, axis=1).astype(jnp.bfloat16)
    return w_k, bias.reshape(cout, 1).astype(jnp.float32)


def conv3x3(inputs, prepped, pads, *, negative_slope=None, out_dtype=jnp.float32):
    """3x3 conv (stride 1, pad 1) over an implicit channel-concat of `inputs`.

    inputs : list of NCHW tensors (B, Ci, H, W), same B/H/W.
    prepped: (w_k, bias2) from prep_conv, with Ci split matching `inputs`.
    pads   : list of padding modes per input ('zero' | 'replicate' | 'reflection').
    Returns (B, Cout, H, W) in `out_dtype`.
    """
    w_k, bias2 = prepped
    B, _, H, W = inputs[0].shape
    cout = w_k.shape[0]
    ci_list = tuple(int(x.shape[1]) for x in inputs)
    k_total = 9 * sum(ci_list)
    assert w_k.shape == (cout, k_total), (w_k.shape, ci_list)

    # padded geometry: 1 top / 2 bottom rows, 1 left col; wp chosen so H*wp % 128 == 0
    hp = H + 3
    wp = W + 2
    while (H * wp) % 128:
        wp += 1
    l_in, l_out = hp * wp, H * wp

    # largest multiple-of-128 tile dividing l_out, capped at _MAX_TILE
    tile, c = 128, 128
    while c <= min(l_out, _MAX_TILE):
        if l_out % c == 0:
            tile = c
        c += 128
    n_tiles = l_out // tile

    x_flat, in_specs = [], []
    for x, pad, ci in zip(inputs, pads, ci_list):
        # semantic 1-pixel border with the requested mode, then zero-extend to (hp, wp)
        xp = jnp.pad(x.astype(jnp.bfloat16),
                     ((0, 0), (0, 0), (1, 1), (1, 1)), mode=_PAD_MODE[pad])
        xp = jnp.pad(xp, ((0, 0), (0, 0), (0, hp - H - 2), (0, wp - W - 2)))
        x_flat.append(xp.reshape(B, ci, l_in))
        in_specs.append(pl.BlockSpec((1, ci, l_in), lambda b: (b, 0, 0)))
    in_specs.append(pl.BlockSpec((cout, k_total), lambda b: (0, 0)))   # weights
    in_specs.append(pl.BlockSpec((cout, 1), lambda b: (0, 0)))         # bias

    kernel = functools.partial(_conv3x3_kernel, ci_list=ci_list, wp=wp, tile=tile,
                               n_tiles=n_tiles, negative_slope=negative_slope)
    out = pl.pallas_call(
        kernel,
        out_shape=jax.ShapeDtypeStruct((B, cout, l_out), out_dtype),
        grid=(B,),
        in_specs=in_specs,
        out_specs=pl.BlockSpec((1, cout, l_out), lambda b: (b, 0, 0)),
        scratch_shapes=[pltpu.VMEM((k_total, tile), jnp.bfloat16)],
        compiler_params=pltpu.CompilerParams(
            dimension_semantics=("parallel",),
            # per-step footprint is ~2 MiB incl. double buffering; explicit limit
            # keeps the kernel portable across v5e/v6e/v7x scoped-VMEM defaults.
            vmem_limit_bytes=32 * 1024 * 1024),
    )(*x_flat, w_k, bias2)
    # strip the (wp - W) pad columns carrying garbage rows of the flattened output
    return out.reshape(B, cout, H, wp)[:, :, :, :W]


# ---------------------------------------------------------------------------
# Inverse Haar DWT (pytorch_wavelets DWTInverse('haar') semantics)
# ---------------------------------------------------------------------------
def haar_iwt(ll, lh, hl, hh):
    """One-level inverse Haar DWT.  Inputs (B,H,W) [bands (LH, HL, HH)], output
    (B, 2H, 2W).  Length-2 Haar filters => the boundary mode has no effect."""
    # TODO(synk): could be fused into the wavelet-head conv epilogue; kept separate.
    B, H, W = ll.shape
    total = B * H * W
    if total % 128 == 0:                      # lane-dense slabs -> unmasked stores
        cols = 128
        while cols * 2 <= 1024 and total % (cols * 2) == 0:
            cols *= 2
        shape2 = (total // cols, cols)
    else:
        shape2 = (B * H, W)
    flat = lambda a: a.astype(jnp.float32).reshape(shape2)
    outs = pl.pallas_call(
        _haar_iwt_kernel,
        out_shape=tuple(jax.ShapeDtypeStruct(shape2, jnp.float32) for _ in range(4)),
    )(flat(ll), flat(lh), flat(hl), flat(hh))
    ee, eo, oe, oo = (o.reshape(B, H, W) for o in outs)
    row_e = jnp.stack([ee, eo], axis=-1)      # (B,H,W,2) even output rows
    row_o = jnp.stack([oe, oo], axis=-1)
    y = jnp.stack([row_e, row_o], axis=2)     # (B,H,2,W,2)
    return y.reshape(B, 2 * H, 2 * W)


# ---------------------------------------------------------------------------
# Bilinear upsample (align_corners=True) as separable resize matmuls
# ---------------------------------------------------------------------------
def _resize_matrix(out_size, in_size):
    if in_size == 1 or out_size == 1:
        m = np.zeros((out_size, in_size), np.float32)
        m[:, 0] = 1.0
        return jnp.asarray(m)
    src = np.arange(out_size, dtype=np.float64) * ((in_size - 1) / (out_size - 1))
    i0 = np.clip(np.floor(src).astype(np.int64), 0, in_size - 2)
    w = (src - i0).astype(np.float32)
    m = np.zeros((out_size, in_size), np.float32)
    m[np.arange(out_size), i0] = 1.0 - w
    m[np.arange(out_size), i0 + 1] += w
    return jnp.asarray(m)


def upsample_bilinear_align_corners(x, out_h, out_w):
    # TODO(synk): kept as two tiny XLA matmuls (plain JAX glue), not a Pallas kernel.
    B, C, H, W = x.shape
    if (H, W) == (out_h, out_w):
        return x
    rh = _resize_matrix(out_h, H)
    rw = _resize_matrix(out_w, W)
    xf = x.astype(jnp.float32)
    y = jnp.einsum("oh,bchw->bcow", rh, xf)
    return jnp.einsum("pw,bcow->bcop", rw, y)


def upsample_block(x, skip, pA, pB):
    """UpSampleBlock: bilinear-up(x) ++ skip -> Conv3x3+LReLU -> Conv3x3+LReLU.
    The channel concat is never materialized: convA takes [up, skip] as two inputs."""
    up = upsample_bilinear_align_corners(x, skip.shape[2], skip.shape[3])
    t = conv3x3([up, skip], pA, ["reflection", "reflection"],
                negative_slope=0.2, out_dtype=jnp.bfloat16)
    return conv3x3([t], pB, ["reflection"], negative_slope=0.2, out_dtype=jnp.bfloat16)


# ---------------------------------------------------------------------------
# One-time parameter preparation (hoisted out of the jitted forward)
# ---------------------------------------------------------------------------
def prepare_decoder_params(raw):
    p = {}
    p["conv2"] = prep_conv([raw["conv2"][0]], raw["conv2"][1])

    c_up = raw["conv2"][0].shape[-1]
    wA, bA = raw["up1A"]
    p["up1A"] = prep_conv([wA[:, :, :c_up], wA[:, :, c_up:]], bA)
    p["up1B"] = prep_conv([raw["up1B"][0]], raw["up1B"][1])

    # fused wave1_ll (replicate pad, Cout=1) + wave1 (zero pad, Cout=3) -> Cout=4
    w_ll, b_ll = raw["wave1_ll"]
    w_w1, b_w1 = raw["wave1"]
    cin = w_ll.shape[2]
    w0 = jnp.concatenate([w_ll, jnp.zeros((3, 3, cin, 3), w_ll.dtype)], axis=-1)
    w1 = jnp.concatenate([jnp.zeros((3, 3, cin, 1), w_w1.dtype), w_w1], axis=-1)
    b4 = jnp.concatenate([b_ll, b_w1])
    p["head1"] = prep_conv([w0, w1], b4)

    c_up = raw["up1B"][0].shape[-1]
    wA, bA = raw["up2A"]
    p["up2A"] = prep_conv([wA[:, :, :c_up], wA[:, :, c_up:]], bA)
    p["up2B"] = prep_conv([raw["up2B"][0]], raw["up2B"][1])
    p["wave2"] = prep_conv([raw["wave2"][0]], raw["wave2"][1])

    c_up = raw["up2B"][0].shape[-1]
    wA, bA = raw["up3A"]
    p["up3A"] = prep_conv([wA[:, :, :c_up], wA[:, :, c_up:]], bA)
    p["up3B"] = prep_conv([raw["up3B"][0]], raw["up3B"][1])
    p["wave3"] = prep_conv([raw["wave3"][0]], raw["wave3"][1])
    return p


# ---------------------------------------------------------------------------
# DecoderWave forward (prepped params)
# ---------------------------------------------------------------------------
def decoder_wave_forward(params, x_blocks):
    """x_blocks: list of 5 NCHW encoder features (coarsest last).  Returns the same
    output dict as DecoderWave.forward; every entry is NCHW float32."""
    p = params
    outputs = {}

    x_d0 = conv3x3([x_blocks[-1]], p["conv2"], ["replicate"], out_dtype=jnp.bfloat16)
    x_d1 = upsample_block(x_d0, x_blocks[-2], p["up1A"], p["up1B"])

    head1 = conv3x3([x_d1, x_d1], p["head1"], ["replicate", "zero"],
                    out_dtype=jnp.float32)                # (B, 4, 16, 16)
    ll = 2.0 ** 3 * head1[:, 0:1]
    h = 2.0 ** 2 * head1[:, 1:4]
    outputs[("disp", 3)] = head1[:, 0:1]
    outputs[("wavelets", 2, "LL")] = ll
    outputs[("wavelets", 2, "LH")] = h[:, 0:1]
    outputs[("wavelets", 2, "HL")] = h[:, 1:2]
    outputs[("wavelets", 2, "HH")] = h[:, 2:3]
    ll = haar_iwt(ll[:, 0], h[:, 0], h[:, 1], h[:, 2])     # (B, 32, 32)
    outputs[("disp", 2)] = (ll / 2.0 ** 2)[:, None]

    x_d2 = upsample_block(x_d1, x_blocks[-3], p["up2A"], p["up2B"])
    h = 2.0 * conv3x3([x_d2], p["wave2"], ["zero"], out_dtype=jnp.float32)
    outputs[("wavelets", 1, "LH")] = h[:, 0:1]
    outputs[("wavelets", 1, "HL")] = h[:, 1:2]
    outputs[("wavelets", 1, "HH")] = h[:, 2:3]
    ll = haar_iwt(ll, h[:, 0], h[:, 1], h[:, 2])           # (B, 64, 64)
    outputs[("disp", 1)] = (ll / 2.0)[:, None]

    x_d3 = upsample_block(x_d2, x_blocks[-4], p["up3A"], p["up3B"])
    h = conv3x3([x_d3], p["wave3"], ["zero"], out_dtype=jnp.float32)
    outputs[("wavelets", 0, "LH")] = h[:, 0:1]
    outputs[("wavelets", 0, "HL")] = h[:, 1:2]
    outputs[("wavelets", 0, "HH")] = h[:, 2:3]
    ll = haar_iwt(ll, h[:, 0], h[:, 1], h[:, 2])           # (B, 128, 128)
    outputs[("disp", 0)] = ll[:, None]
    return outputs


# ---------------------------------------------------------------------------
# Plain-JAX / XLA reference (same bf16 quantization points) for validation
# ---------------------------------------------------------------------------
def _ref_conv3x3(inputs, w, bias, pads, negative_slope=None, out_dtype=jnp.float32):
    xs = [jnp.pad(x.astype(jnp.bfloat16), ((0, 0), (0, 0), (1, 1), (1, 1)),
                  mode=_PAD_MODE[p]) for x, p in zip(inputs, pads)]
    cat = jnp.concatenate(xs, axis=1) if len(xs) > 1 else xs[0]
    y = jax.lax.conv_general_dilated(
        cat, w.astype(jnp.bfloat16), (1, 1), "VALID",
        dimension_numbers=("NCHW", "HWIO", "NCHW"),
        preferred_element_type=jnp.float32)
    y = y + bias[None, :, None, None]
    if negative_slope is not None:
        y = jnp.where(y >= 0.0, y, negative_slope * y)
    return y.astype(out_dtype)


def _ref_haar_iwt(ll, lh, hl, hh):
    # filter-bank form of pytorch_wavelets SFB2D with pywt 'haar' rec filters
    s = 2.0 ** -0.5
    g0, g1 = (s, s), (s, -s)

    def sfb_rows(a, b):
        e, o = g0[0] * a + g1[0] * b, g0[1] * a + g1[1] * b
        B, H, W = a.shape
        return jnp.stack([e, o], axis=2).reshape(B, 2 * H, W)

    def sfb_cols(a, b):
        e, o = g0[0] * a + g1[0] * b, g0[1] * a + g1[1] * b
        B, H, W = a.shape
        return jnp.stack([e, o], axis=3).reshape(B, H, 2 * W)

    return sfb_cols(sfb_rows(ll, lh), sfb_rows(hl, hh))


def decoder_wave_reference(raw, x_blocks):
    outputs = {}

    def up(x, skip, pA, pB):
        u = upsample_bilinear_align_corners(x, skip.shape[2], skip.shape[3])
        t = _ref_conv3x3([u, skip], pA[0], pA[1], ["reflection", "reflection"],
                         0.2, jnp.bfloat16)
        return _ref_conv3x3([t], pB[0], pB[1], ["reflection"], 0.2, jnp.bfloat16)

    x_d0 = _ref_conv3x3([x_blocks[-1]], raw["conv2"][0], raw["conv2"][1],
                        ["replicate"], None, jnp.bfloat16)
    x_d1 = up(x_d0, x_blocks[-2], raw["up1A"], raw["up1B"])
    ll = 8.0 * _ref_conv3x3([x_d1], raw["wave1_ll"][0], raw["wave1_ll"][1], ["replicate"])
    outputs[("disp", 3)] = ll / 8.0
    h = 4.0 * _ref_conv3x3([x_d1], raw["wave1"][0], raw["wave1"][1], ["zero"])
    outputs[("wavelets", 2, "LL")] = ll
    outputs[("wavelets", 2, "LH")] = h[:, 0:1]
    outputs[("wavelets", 2, "HL")] = h[:, 1:2]
    outputs[("wavelets", 2, "HH")] = h[:, 2:3]
    ll = _ref_haar_iwt(ll[:, 0], h[:, 0], h[:, 1], h[:, 2])
    outputs[("disp", 2)] = (ll / 4.0)[:, None]

    x_d2 = up(x_d1, x_blocks[-3], raw["up2A"], raw["up2B"])
    h = 2.0 * _ref_conv3x3([x_d2], raw["wave2"][0], raw["wave2"][1], ["zero"])
    outputs[("wavelets", 1, "LH")] = h[:, 0:1]
    outputs[("wavelets", 1, "HL")] = h[:, 1:2]
    outputs[("wavelets", 1, "HH")] = h[:, 2:3]
    ll = _ref_haar_iwt(ll, h[:, 0], h[:, 1], h[:, 2])
    outputs[("disp", 1)] = (ll / 2.0)[:, None]

    x_d3 = up(x_d2, x_blocks[-4], raw["up3A"], raw["up3B"])
    h = _ref_conv3x3([x_d3], raw["wave3"][0], raw["wave3"][1], ["zero"])
    outputs[("wavelets", 0, "LH")] = h[:, 0:1]
    outputs[("wavelets", 0, "HL")] = h[:, 1:2]
    outputs[("wavelets", 0, "HH")] = h[:, 2:3]
    ll = _ref_haar_iwt(ll, h[:, 0], h[:, 1], h[:, 2])
    outputs[("disp", 0)] = ll[:, None]
    return outputs


# ---------------------------------------------------------------------------
# Deterministic synthetic parameters (shapes from DecoderWave.__init__)
# ---------------------------------------------------------------------------
def _conv_param(key, cin, cout):
    kw, kb = jax.random.split(key)
    bound = 1.0 / (9.0 * cin) ** 0.5
    w = jax.random.uniform(kw, (3, 3, cin, cout), jnp.float32, -bound, bound)
    b = jax.random.uniform(kb, (cout,), jnp.float32, -bound, bound)
    return w, b


def init_decoder_params(key, enc_features, decoder_width=0.5):
    f = int(enc_features[-1] * decoder_width)
    layer_io = {
        "conv2":    (enc_features[-1], f),
        "up1A":     (f + enc_features[-2], f // 2),
        "up1B":     (f // 2, f // 2),
        "wave1_ll": (f // 2, 1),
        "wave1":    (f // 2, 3),
        "up2A":     (f // 2 + enc_features[-3], f // 4),
        "up2B":     (f // 4, f // 4),
        "wave2":    (f // 4, 3),
        "up3A":     (f // 4 + enc_features[-4], f // 8),
        "up3B":     (f // 8, f // 8),
        "wave3":    (f // 8, 3),
    }
    keys = jax.random.split(key, len(layer_io))
    return {
        name: _conv_param(k, cin, cout)
        for k, (name, (cin, cout)) in zip(keys, layer_io.items())
    }


# ---------------------------------------------------------------------------
# Single-conv correctness check of the fused K-stacked kernel
# ---------------------------------------------------------------------------
def _check_conv_against_reference():
    key = jax.random.PRNGKey(42)
    k1, k2, k3, k4 = jax.random.split(key, 4)
    x1 = jax.random.normal(k1, (2, 16, 16, 16), jnp.float32)
    x2 = jax.random.normal(k2, (2, 8, 16, 16), jnp.float32)
    w = jax.random.normal(k3, (3, 3, 24, 8), jnp.float32) * 0.1
    b = jax.random.normal(k4, (8,), jnp.float32) * 0.1

    prepped = prep_conv([w[:, :, :16], w[:, :, 16:]], b)
    out = conv3x3([x1, x2], prepped, ["reflection", "zero"],
                  negative_slope=0.2, out_dtype=jnp.float32)
    ref = _ref_conv3x3([x1, x2], w, b, ["reflection", "zero"], 0.2, jnp.float32)

    err = jnp.max(jnp.abs(out - ref)) / (jnp.max(jnp.abs(ref)) + 1e-6)
    assert float(err) < 2e-2, f"conv3x3 mismatch vs reference: rel err {float(err)}"


if __name__ == "__main__":
    _check_conv_against_reference()

    # small-but-consistent encoder pyramid (dw_waveconv=False, dw_upconv=False)
    enc_features = [16, 16, 32, 64, 128]
    spatial = [128, 64, 32, 16, 8]          # coarsest last, doubling each level
    B = 2

    root = jax.random.PRNGKey(0)
    k_params, k_inputs = jax.random.split(root)
    raw_params = init_decoder_params(k_params, enc_features, decoder_width=0.5)
    params = prepare_decoder_params(raw_params)       # one-time, outside jit

    in_keys = jax.random.split(k_inputs, len(enc_features))
    x_blocks = [
        jax.random.normal(k, (B, c, s, s), jnp.float32)
        for k, c, s in zip(in_keys, enc_features, spatial)
    ]

    fwd = jax.jit(decoder_wave_forward)
    outputs = jax.block_until_ready(fwd(params, x_blocks))

    # sanity: shapes implied by the PyTorch forward
    assert outputs[("disp", 3)].shape == (B, 1, 16, 16)
    assert outputs[("disp", 2)].shape == (B, 1, 32, 32)
    assert outputs[("disp", 1)].shape == (B, 1, 64, 64)
    assert outputs[("disp", 0)].shape == (B, 1, 128, 128)
    assert outputs[("wavelets", 2, "LL")].shape == (B, 1, 16, 16)
    assert outputs[("wavelets", 1, "HH")].shape == (B, 1, 32, 32)
    assert all(bool(jnp.all(jnp.isfinite(v))) for v in outputs.values())

    # end-to-end check vs a plain-JAX/XLA reference with matching bf16 quantization
    ref_outputs = jax.block_until_ready(jax.jit(decoder_wave_reference)(raw_params, x_blocks))
    for key, o in outputs.items():
        r = ref_outputs[key]
        assert o.shape == r.shape, key
        err = float(jnp.max(jnp.abs(o.astype(jnp.float32) - r.astype(jnp.float32)))
                    / (jnp.max(jnp.abs(r)) + 1e-6))
        assert err < 5e-2, f"end-to-end mismatch at {key}: rel err {err}"

    print("KERNEL_OK")
</pallas_src>

<mosaic_0001>
module attributes {stable_mosaic.version = 11 : i64} {
  func.func @_conv3x3_kernel(%arg0: i32, %arg1: memref<1x16x456xbf16, #tpu.memory_space<vmem>>, %arg2: memref<1x8x456xbf16, #tpu.memory_space<vmem>>, %arg3: memref<8x216xbf16, #tpu.memory_space<vmem>>, %arg4: memref<8x1xf32, #tpu.memory_space<vmem>>, %arg5: memref<1x8x384xf32, #tpu.memory_space<vmem>>, %arg6: memref<216x384xbf16, #tpu.memory_space<vmem>>) attributes {dimension_semantics = [#tpu.dimension_semantics<parallel>], iteration_bounds = array<i64: 2>, scalar_prefetch = 0 : i64, scratch_operands = 1 : i64, tpu.core_type = #tpu.core_type<tc>, window_params = [{transform_indices = @transform_0, window_bounds = array<i64: 1, 16, 456>}, {transform_indices = @transform_1, window_bounds = array<i64: 1, 8, 456>}, {pipeline_mode = #tpu.pipeline_mode<synchronous>, transform_indices = @transform_2, window_bounds = array<i64: 8, 216>}, {pipeline_mode = #tpu.pipeline_mode<synchronous>, transform_indices = @transform_3, window_bounds = array<i64: 8, 1>}, {transform_indices = @transform_4, window_bounds = array<i64: 1, 8, 384>}]} {
    %c0 = arith.constant 0 : index
    %c0_0 = arith.constant 0 : index
    %0 = vector.load %arg4[%c0, %c0_0] : memref<8x1xf32, #tpu.memory_space<vmem>>, vector<8x1xf32>
    %c0_1 = arith.constant 0 : index
    %c0_2 = arith.constant 0 : index
    %c0_3 = arith.constant 0 : index
    %1 = vector.load %arg1[%c0_1, %c0_2, %c0_3] : memref<1x16x456xbf16, #tpu.memory_space<vmem>>, vector<1x16x384xbf16>
    %2 = vector.shape_cast %1 : vector<1x16x384xbf16> to vector<16x384xbf16>
    %c0_4 = arith.constant 0 : index
    %c0_5 = arith.constant 0 : index
    %3 = vector.load %arg6[%c0_4, %c0_5] : memref<216x384xbf16, #tpu.memory_space<vmem>>, vector<16x384xbf16>
    tpu.vector_store %arg6[%c0_4, %c0_5], %2 {strides = array<i32>} : memref<216x384xbf16, #tpu.memory_space<vmem>>, vector<16x384xbf16>,
    %c0_6 = arith.constant 0 : index
    %c0_7 = arith.constant 0 : index
    %c1 = arith.constant 1 : index
    %4 = vector.load %arg1[%c0_6, %c0_7, %c1] : memref<1x16x456xbf16, #tpu.memory_space<vmem>>, vector<1x16x384xbf16>
    %5 = vector.shape_cast %4 : vector<1x16x384xbf16> to vector<16x384xbf16>
    %c16 = arith.constant 16 : index
    %c0_8 = arith.constant 0 : index
    %6 = vector.load %arg6[%c16, %c0_8] : memref<216x384xbf16, #tpu.memory_space<vmem>>, vector<16x384xbf16>
    tpu.vector_store %arg6[%c16, %c0_8], %5 {strides = array<i32>} : memref<216x384xbf16, #tpu.memory_space<vmem>>, vector<16x384xbf16>,
    %c0_9 = arith.constant 0 : index
    %c0_10 = arith.constant 0 : index
    %c2 = arith.constant 2 : index
    %7 = vector.load %arg1[%c0_9, %c0_10, %c2] : memref<1x16x456xbf16, #tpu.memory_space<vmem>>, vector<1x16x384xbf16>
    %8 = vector.shape_cast %7 : vector<1x16x384xbf16> to vector<16x384xbf16>
    %c32 = arith.constant 32 : index
    %c0_11 = arith.constant 0 : index
    %9 = vector.load %arg6[%c32, %c0_11] : memref<216x384xbf16, #tpu.memory_space<vmem>>, vector<16x384xbf16>
    tpu.vector_store %arg6[%c32, %c0_11], %8 {strides = array<i32>} : memref<216x384xbf16, #tpu.memory_space<vmem>>, vector<16x384xbf16>,
    %c0_12 = arith.constant 0 : index
    %c0_13 = arith.constant 0 : index
    %c24 = arith.constant 24 : index
    %10 = vector.load %arg1[%c0_12, %c0_13, %c24] : memref<1x16x456xbf16, #tpu.memory_space<vmem>>, vector<1x16x384xbf16>
    %11 = vector.shape_cast %10 : vector<1x16x384xbf16> to vector<16x384xbf16>
    %c48 = arith.constant 48 : index
    %c0_14 = arith.constant 0 : index
    %12 = vector.load %arg6[%c48, %c0_14] : memref<216x384xbf16, #tpu.memory_space<vmem>>, vector<16x384xbf16>
    tpu.vector_store %arg6[%c48, %c0_14], %11 {strides = array<i32>} : memref<216x384xbf16, #tpu.memory_space<vmem>>, vector<16x384xbf16>,
    %c0_15 = arith.constant 0 : index
    %c0_16 = arith.constant 0 : index
    %c25 = arith.constant 25 : index
    %13 = vector.load %arg1[%c0_15, %c0_16, %c25] : memref<1x16x456xbf16, #tpu.memory_space<vmem>>, vector<1x16x384xbf16>
    %14 = vector.shape_cast %13 : vector<1x16x384xbf16> to vector<16x384xbf16>
    %c64 = arith.constant 64 : index
    %c0_17 = arith.constant 0 : index
    %15 = vector.load %arg6[%c64, %c0_17] : memref<216x384xbf16, #tpu.memory_space<vmem>>, vector<16x384xbf16>
    tpu.vector_store %arg6[%c64, %c0_17], %14 {strides = array<i32>} : memref<216x384xbf16, #tpu.memory_space<vmem>>, vector<16x384xbf16>,
    %c0_18 = arith.constant 0 : index
    %c0_19 = arith.constant 0 : index
    %c26 = arith.constant 26 : index
    %16 = vector.load %arg1[%c0_18, %c0_19, %c26] : memref<1x16x456xbf16, #tpu.memory_space<vmem>>, vector<1x16x384xbf16>
    %17 = vector.shape_cast %16 : vector<1x16x384xbf16> to vector<16x384xbf16>
    %c80 = arith.constant 80 : index
    %c0_20 = arith.constant 0 : index
    %18 = vector.load %arg6[%c80, %c0_20] : memref<216x384xbf16, #tpu.memory_space<vmem>>, vector<16x384xbf16>
    tpu.vector_store %arg6[%c80, %c0_20], %17 {strides = array<i32>} : memref<216x384xbf16, #tpu.memory_space<vmem>>, vector<16x384xbf16>,
    %c0_21 = arith.constant 0 : index
    %c0_22 = arith.constant 0 : index
    %c48_23 = arith.constant 48 : index
    %19 = vector.load %arg1[%c0_21, %c0_22, %c48_23] : memref<1x16x456xbf16, #tpu.memory_space<vmem>>, vector<1x16x384xbf16>
    %20 = vector.shape_cast %19 : vector<1x16x384xbf16> to vector<16x384xbf16>
    %c96 = arith.constant 96 : index
    %c0_24 = arith.constant 0 : index
    %21 = vector.load %arg6[%c96, %c0_24] : memref<216x384xbf16, #tpu.memory_space<vmem>>, vector<16x384xbf16>
    tpu.vector_store %arg6[%c96, %c0_24], %20 {strides = array<i32>} : memref<216x384xbf16, #tpu.memory_space<vmem>>, vector<16x384xbf16>,
    %c0_25 = arith.constant 0 : index
    %c0_26 = arith.constant 0 : index
    %c49 = arith.constant 49 : index
    %22 = vector.load %arg1[%c0_25, %c0_26, %c49] : memref<1x16x456xbf16, #tpu.memory_space<vmem>>, vector<1x16x384xbf16>
    %23 = vector.shape_cast %22 : vector<1x16x384xbf16> to vector<16x384xbf16>
    %c112 = arith.constant 112 : index
    %c0_27 = arith.constant 0 : index
    %24 = vector.load %arg6[%c112, %c0_27] : memref<216x384xbf16, #tpu.memory_space<vmem>>, vector<16x384xbf16>
    tpu.vector_store %arg6[%c112, %c0_27], %23 {strides = array<i32>} : memref<216x384xbf16, #tpu.memory_space<vmem>>, vector<16x384xbf16>,
    %c0_28 = arith.constant 0 : index
    %c0_29 = arith.constant 0 : index
    %c50 = arith.constant 50 : index
    %25 = vector.load %arg1[%c0_28, %c0_29, %c50] : memref<1x16x456xbf16, #tpu.memory_space<vmem>>, vector<1x16x384xbf16>
    %26 = vector.shape_cast %25 : vector<1x16x384xbf16> to vector<16x384xbf16>
    %c128 = arith.constant 128 : index
    %c0_30 = arith.constant 0 : index
    %27 = vector.load %arg6[%c128, %c0_30] : memref<216x384xbf16, #tpu.memory_space<vmem>>, vector<16x384xbf16>
    tpu.vector_store %arg6[%c128, %c0_30], %26 {strides = array<i32>} : memref<216x384xbf16, #tpu.memory_space<vmem>>, vector<16x384xbf16>,
    %c0_31 = arith.constant 0 : index
    %c0_32 = arith.constant 0 : index
    %c0_33 = arith.constant 0 : index
    %28 = vector.load %arg2[%c0_31, %c0_32, %c0_33] : memref<1x8x456xbf16, #tpu.memory_space<vmem>>, vector<1x8x384xbf16>
    %29 = vector.shape_cast %28 : vector<1x8x384xbf16> to vector<8x384xbf16>
    %c144 = arith.constant 144 : index
    %c0_34 = arith.constant 0 : index
    %30 = vector.load %arg6[%c144, %c0_34] : memref<216x384xbf16, #tpu.memory_space<vmem>>, vector<8x384xbf16>
    tpu.vector_store %arg6[%c144, %c0_34], %29 {strides = array<i32>} : memref<216x384xbf16, #tpu.memory_space<vmem>>, vector<8x384xbf16>,
    %c0_35 = arith.constant 0 : index
    %c0_36 = arith.constant 0 : index
    %c1_37 = arith.constant 1 : index
    %31 = vector.load %arg2[%c0_35, %c0_36, %c1_37] : memref<1x8x456xbf16, #tpu.memory_space<vmem>>, vector<1x8x384xbf16>
    %32 = vector.shape_cast %31 : vector<1x8x384xbf16> to vector<8x384xbf16>
    %c152 = arith.constant 152 : index
    %c0_38 = arith.constant 0 : index
    %33 = vector.load %arg6[%c152, %c0_38] : memref<216x384xbf16, #tpu.memory_space<vmem>>, vector<8x384xbf16>
    tpu.vector_store %arg6[%c152, %c0_38], %32 {strides = array<i32>} : memref<216x384xbf16, #tpu.memory_space<vmem>>, vector<8x384xbf16>,
    %c0_39 = arith.constant 0 : index
    %c0_40 = arith.constant 0 : index
    %c2_41 = arith.constant 2 : index
    %34 = vector.load %arg2[%c0_39, %c0_40, %c2_41] : memref<1x8x456xbf16, #tpu.memory_space<vmem>>, vector<1x8x384xbf16>
    %35 = vector.shape_cast %34 : vector<1x8x384xbf16> to vector<8x384xbf16>
    %c160 = arith.constant 160 : index
    %c0_42 = arith.constant 0 : index
    %36 = vector.load %arg6[%c160, %c0_42] : memref<216x384xbf16, #tpu.memory_space<vmem>>, vector<8x384xbf16>
    tpu.vector_store %arg6[%c160, %c0_42], %35 {strides = array<i32>} : memref<216x384xbf16, #tpu.memory_space<vmem>>, vector<8x384xbf16>,
    %c0_43 = arith.constant 0 : index
    %c0_44 = arith.constant 0 : index
    %c24_45 = arith.constant 24 : index
    %37 = vector.load %arg2[%c0_43, %c0_44, %c24_45] : memref<1x8x456xbf16, #tpu.memory_space<vmem>>, vector<1x8x384xbf16>
    %38 = vector.shape_cast %37 : vector<1x8x384xbf16> to vector<8x384xbf16>
    %c168 = arith.constant 168 : index
    %c0_46 = arith.constant 0 : index
    %39 = vector.load %arg6[%c168, %c0_46] : memref<216x384xbf16, #tpu.memory_space<vmem>>, vector<8x384xbf16>
    tpu.vector_store %arg6[%c168, %c0_46], %38 {strides = array<i32>} : memref<216x384xbf16, #tpu.memory_space<vmem>>, vector<8x384xbf16>,
    %c0_47 = arith.constant 0 : index
    %c0_48 = arith.constant 0 : index
    %c25_49 = arith.constant 25 : index
    %40 = vector.load %arg2[%c0_47, %c0_48, %c25_49] : memref<1x8x456xbf16, #tpu.memory_space<vmem>>, vector<1x8x384xbf16>
    %41 = vector.shape_cast %40 : vector<1x8x384xbf16> to vector<8x384xbf16>
    %c176 = arith.constant 176 : index
    %c0_50 = arith.constant 0 : index
    %42 = vector.load %arg6[%c176, %c0_50] : memref<216x384xbf16, #tpu.memory_space<vmem>>, vector<8x384xbf16>
    tpu.vector_store %arg6[%c176, %c0_50], %41 {strides = array<i32>} : memref<216x384xbf16, #tpu.memory_space<vmem>>, vector<8x384xbf16>,
    %c0_51 = arith.constant 0 : index
    %c0_52 = arith.constant 0 : index
    %c26_53 = arith.constant 26 : index
    %43 = vector.load %arg2[%c0_51, %c0_52, %c26_53] : memref<1x8x456xbf16, #tpu.memory_space<vmem>>, vector<1x8x384xbf16>
    %44 = vector.shape_cast %43 : vector<1x8x384xbf16> to vector<8x384xbf16>
    %c184 = arith.constant 184 : index
    %c0_54 = arith.constant 0 : index
    %45 = vector.load %arg6[%c184, %c0_54] : memref<216x384xbf16, #tpu.memory_space<vmem>>, vector<8x384xbf16>
    tpu.vector_store %arg6[%c184, %c0_54], %44 {strides = array<i32>} : memref<216x384xbf16, #tpu.memory_space<vmem>>, vector<8x384xbf16>,
    %c0_55 = arith.constant 0 : index
    %c0_56 = arith.constant 0 : index
    %c48_57 = arith.constant 48 : index
    %46 = vector.load %arg2[%c0_55, %c0_56, %c48_57] : memref<1x8x456xbf16, #tpu.memory_space<vmem>>, vector<1x8x384xbf16>
    %47 = vector.shape_cast %46 : vector<1x8x384xbf16> to vector<8x384xbf16>
    %c192 = arith.constant 192 : index
    %c0_58 = arith.constant 0 : index
    %48 = vector.load %arg6[%c192, %c0_58] : memref<216x384xbf16, #tpu.memory_space<vmem>>, vector<8x384xbf16>
    tpu.vector_store %arg6[%c192, %c0_58], %47 {strides = array<i32>} : memref<216x384xbf16, #tpu.memory_space<vmem>>, vector<8x384xbf16>,
    %c0_59 = arith.constant 0 : index
    %c0_60 = arith.constant 0 : index
    %c49_61 = arith.constant 49 : index
    %49 = vector.load %arg2[%c0_59, %c0_60, %c49_61] : memref<1x8x456xbf16, #tpu.memory_space<vmem>>, vector<1x8x384xbf16>
    %50 = vector.shape_cast %49 : vector<1x8x384xbf16> to vector<8x384xbf16>
    %c200 = arith.constant 200 : index
    %c0_62 = arith.constant 0 : index
    %51 = vector.load %arg6[%c200, %c0_62] : memref<216x384xbf16, #tpu.memory_space<vmem>>, vector<8x384xbf16>
    tpu.vector_store %arg6[%c200, %c0_62], %50 {strides = array<i32>} : memref<216x384xbf16, #tpu.memory_space<vmem>>, vector<8x384xbf16>,
    %c0_63 = arith.constant 0 : index
    %c0_64 = arith.constant 0 : index
    %c50_65 = arith.constant 50 : index
    %52 = vector.load %arg2[%c0_63, %c0_64, %c50_65] : memref<1x8x456xbf16, #tpu.memory_space<vmem>>, vector<1x8x384xbf16>
    %53 = vector.shape_cast %52 : vector<1x8x384xbf16> to vector<8x384xbf16>
    %c208 = arith.constant 208 : index
    %c0_66 = arith.constant 0 : index
    %54 = vector.load %arg6[%c208, %c0_66] : memref<216x384xbf16, #tpu.memory_space<vmem>>, vector<8x384xbf16>
    tpu.vector_store %arg6[%c208, %c0_66], %53 {strides = array<i32>} : memref<216x384xbf16, #tpu.memory_space<vmem>>, vector<8x384xbf16>,
    %c0_67 = arith.constant 0 : index
    %c0_68 = arith.constant 0 : index
    %55 = vector.load %arg3[%c0_67, %c0_68] : memref<8x216xbf16, #tpu.memory_space<vmem>>, vector<8x216xbf16>
    %c0_69 = arith.constant 0 : index
    %c0_70 = arith.constant 0 : index
    %56 = vector.load %arg6[%c0_69, %c0_70] : memref<216x384xbf16, #tpu.memory_space<vmem>>, vector<216x384xbf16>
    %cst = arith.constant dense<0.000000e+00> : vector<8x384xf32>
    %57 = tpu.matmul %55, %56, %cst {dimension_numbers = #tpu.dot_dimension_numbers<[1], [0], [0], [1], [0, 0, 1, 1], [], []>} : vector<8x216xbf16>, vector<216x384xbf16>, vector<8x384xf32> -> vector<8x384xf32>
    %58 = vector.broadcast %0 : vector<8x1xf32> to vector<8x384xf32>
    %59 = arith.addf %57, %58 : vector<8x384xf32>
    %cst_71 = arith.constant 0.000000e+00 : f32
    %60 = vector.broadcast %cst_71 : f32 to vector<8x384xf32>
    %61 = arith.cmpf oge, %59, %60 : vector<8x384xf32>
    %cst_72 = arith.constant 2.000000e-01 : f32
    %62 = vector.broadcast %cst_72 : f32 to vector<8x384xf32>
    %63 = arith.mulf %62, %59 : vector<8x384xf32>
    %64 = arith.select %61, %59, %63 : vector<8x384xi1>, vector<8x384xf32>
    %c0_73 = arith.constant 0 : index
    %c0_74 = arith.constant 0 : index
    %c0_75 = arith.constant 0 : index
    %65 = vector.load %arg5[%c0_73, %c0_74, %c0_75] : memref<1x8x384xf32, #tpu.memory_space<vmem>>, vector<1x8x384xf32>
    %66 = vector.shape_cast %65 : vector<1x8x384xf32> to vector<8x384xf32>
    %67 = vector.shape_cast %64 : vector<8x384xf32> to vector<1x8x384xf32>
    tpu.vector_store %arg5[%c0_73, %c0_74, %c0_75], %67 {strides = array<i32>} : memref<1x8x384xf32, #tpu.memory_space<vmem>>, vector<1x8x384xf32>,
    return
  }
  func.func @transform_0(%arg0: i32) -> (i32, i32, i32) {
    %c0_i32 = arith.constant 0 : i32
    %c0_i32_0 = arith.constant 0 : i32
    %c0_i32_1 = arith.constant 0 : i32
    return %arg0, %c0_i32, %c0_i32_0 : i32, i32, i32
  }
  func.func @transform_1(%arg0: i32) -> (i32, i32, i32) {
    %c0_i32 = arith.constant 0 : i32
    %c0_i32_0 = arith.constant 0 : i32
    %c0_i32_1 = arith.constant 0 : i32
    return %arg0, %c0_i32, %c0_i32_0 : i32, i32, i32
  }
  func.func @transform_2(%arg0: i32) -> (i32, i32) {
    %c0_i32 = arith.constant 0 : i32
    %c0_i32_0 = arith.constant 0 : i32
    %c0_i32_1 = arith.constant 0 : i32
    return %c0_i32, %c0_i32_0 : i32, i32
  }
  func.func @transform_3(%arg0: i32) -> (i32, i32) {
    %c0_i32 = arith.constant 0 : i32
    %c0_i32_0 = arith.constant 0 : i32
    %c0_i32_1 = arith.constant 0 : i32
    return %c0_i32, %c0_i32_0 : i32, i32
  }
  func.func @transform_4(%arg0: i32) -> (i32, i32, i32) {
    %c0_i32 = arith.constant 0 : i32
    %c0_i32_0 = arith.constant 0 : i32
    %c0_i32_1 = arith.constant 0 : i32
    return %arg0, %c0_i32, %c0_i32_0 : i32, i32, i32
  }
}

</mosaic_0001>

<llo_original>
// kernel: tpu_custom_call.1
$region0: #{tpu_custom_call.1}
  #allocation0 [shape = 'u32[]', space=smem, size = 0x4, offset = 0x4, fixed_abs, tag = 'smem constant byte address 0x4 - core index']
  #allocation1 [shape = 'u32[72,128]{1,0:T(1,128)}', space=vmem, size = 0x9000, scoped, tag = 'internal scratch']
  #allocation2 [shape = 'bf16[216,384]{1,0:T(8,128)(2,1)}', space=vmem, size = 0x28800, scoped, tag = 'scratch operand']
  %s0 = inlined_call_operand.hbm [shape: bf16[2,16,456], index: 0, kind: input, shape index: {}]
  %s1 = inlined_call_operand.hbm [shape: bf16[2,8,456], index: 1, kind: input, shape index: {}]
  %s2 = inlined_call_operand.vmem [shape: bf16[8,216], index: 2, kind: input, shape index: {}]
  %s3 = inlined_call_operand.vmem [shape: f32[8,1], index: 3, kind: input, shape index: {}]
  %s4 = inlined_call_operand.hbm [shape: f32[2,8,384], index: 4, kind: output, shape index: {}]
  %s5 = sld [smem:[#allocation0]]
  $region57: #{tpu_custom_call.1} parent=0
    _
  %s7 = ssub.s32 1, %s5
  %s8 = scalar_select 0, %s7, %s5
  $region1: #{tpu_custom_call.1} parent=0
    #allocation3 [shape = 'u8[32768]{0}', space=vmem, size = 0x8000, scoped, tag = 'input window, operand 0']
    #allocation4 [shape = 's32[2]{0}', space=sflag, size = 0x8, scoped, tag = 'scoped memory for tpu_custom_call.1']
    #allocation5 [shape = 's32[2]{0}', space=sflag, size = 0x8, scoped, tag = 'scoped memory for tpu_custom_call.1']
    #allocation6 [shape = 'u8[16384]{0}', space=vmem, size = 0x4000, scoped, tag = 'input window, operand 1']
    #allocation7 [shape = 's32[2]{0}', space=sflag, size = 0x8, scoped, tag = 'scoped memory for tpu_custom_call.1']
    #allocation8 [shape = 'u8[24576]{0}', space=vmem, size = 0x6000, scoped, tag = 'output window, operand 0']
    %9 = vsyncpa [#allocation4], 0
    %s10 = scalar_lea.sflag [#allocation4], 1
    %11 = vsyncpa %s10, 0
    %12 = vsyncpa [#allocation7], 0
    %s13 = scalar_lea.sflag [#allocation7], 1
    %14 = vsyncpa %s13, 0
    %15 = vsyncpa [#allocation5], 0
    %s16 = scalar_lea.sflag [#allocation5], 1
    %17 = vsyncpa %s16, 0
    loop: start=0, step=1, limit=4
    $region2: #{tpu_custom_call.1} parent=1 // loop_pre_header
      _
    $region3: #{tpu_custom_call.1} parent=1 // loop_header
      %s19 = sphi 0, %s23
      %p20 = scmp.ge.s32.totalorder %s19, 4
      %s29 = sphi 0, %s31
      %s32 = sphi 0, %s29
      %s33 = sphi 0, %s32
      %s49 = sphi 0, %s33
      %s55 = sphi 0, %s57
      %s58 = sphi 0, %s55
      %s59 = sphi 0, %s58
      %s75 = sphi 0, %s59
      %s79 = sphi 0, %s79
      %s81 = sphi 0, %s79
      %s82 = sphi 0, %s81
      %s96 = sphi 0, %s82
      %s100 = sphi 0, %s100
      %s102 = sphi 0, %s100
      %s103 = sphi 0, %s102
      %s117 = sphi 0, %s103
      %s123 = sphi 0, %s125
      %s126 = sphi 0, %s123
      %s127 = sphi 0, %s126
      %s143 = sphi 0, %s127
    $region4: #{tpu_custom_call.1} parent=1 // loop_header_branch
      %22 = sbr.rel (%p20) target = $region8
    $region5: #{tpu_custom_call.1} parent=1 // loop_body
      %s24 = ssub.s32 %s19, 1
      %s25 = ssub.s32 %s19, 2
      %s26 = sadd.s32 %s19, 1
      %s27 = ssub.s32 %s19, %s26
      %p28 = scmp.eq.s32.totalorder %s27, 0
      %s30 = sadd.s32 %s29, 1
      %s31 = scalar_select %p28, %s29, %s30
      %p34 = pneg %p28
      %p35 = scmp.eq.s32.totalorder %s19, 1
      %p36 = por %p34, %p35
      %p37 = scmp.ne.s32.totalorder %s29, %s32
      %p38 = scmp.eq.s32.totalorder %s19, 0
      %p39 = por %p37, %p38
      %p40 = scmp.ne.s32.totalorder %s29, %s32
      %p41 = scmp.eq.s32.totalorder %s24, 1
      %p42 = por %p40, %p41
      %p43 = scmp.ne.s32.totalorder %s32, %s33
      %p44 = scmp.eq.s32.totalorder %s24, 0
      %p45 = por %p43, %p44
      %p46 = scmp.ne.s32.totalorder %s32, %s33
      %p47 = scmp.eq.s32.totalorder %s25, 1
      %p48 = por %p46, %p47
      %p50 = scmp.ne.s32.totalorder %s33, %s49
      %p51 = scmp.eq.s32.totalorder %s25, 0
      %p52 = por %p50, %p51
      %s53 = ssub.s32 %s19, %s26
      %p54 = scmp.eq.s32.totalorder %s53, 0
      %s56 = sadd.s32 %s55, 1
      %s57 = scalar_select %p54, %s55, %s56
      %p60 = pneg %p54
      %p61 = scmp.eq.s32.totalorder %s19, 1
      %p62 = por %p60, %p61
      %p63 = scmp.ne.s32.totalorder %s55, %s58
      %p64 = scmp.eq.s32.totalorder %s19, 0
      %p65 = por %p63, %p64
      %p66 = scmp.ne.s32.totalorder %s55, %s58
      %p67 = scmp.eq.s32.totalorder %s24, 1
      %p68 = por %p66, %p67
      %p69 = scmp.ne.s32.totalorder %s58, %s59
      %p70 = scmp.eq.s32.totalorder %s24, 0
      %p71 = por %p69, %p70
      %p72 = scmp.ne.s32.totalorder %s58, %s59
      %p73 = scmp.eq.s32.totalorder %s25, 1
      %p74 = por %p72, %p73
      %p76 = scmp.ne.s32.totalorder %s59, %s75
      %p77 = scmp.eq.s32.totalorder %s25, 0
      %p78 = por %p76, %p77
      %s80 = sadd.s32 %s79, 1
      %p83 = scmp.eq.s32.totalorder %s19, 1
      %p84 = scmp.ne.s32.totalorder %s79, %s81
      %p85 = scmp.eq.s32.totalorder %s19, 0
      %p86 = por %p84, %p85
      %p87 = scmp.ne.s32.totalorder %s79, %s81
      %p88 = scmp.eq.s32.totalorder %s24, 1
      %p89 = por %p87, %p88
      %p90 = scmp.ne.s32.totalorder %s81, %s82
      %p91 = scmp.eq.s32.totalorder %s24, 0
      %p92 = por %p90, %p91
      %p93 = scmp.ne.s32.totalorder %s81, %s82
      %p94 = scmp.eq.s32.totalorder %s25, 1
      %p95 = por %p93, %p94
      %p97 = scmp.ne.s32.totalorder %s82, %s96
      %p98 = scmp.eq.s32.totalorder %s25, 0
      %p99 = por %p97, %p98
      %s101 = sadd.s32 %s100, 1
      %p104 = scmp.eq.s32.totalorder %s19, 1
      %p105 = scmp.ne.s32.totalorder %s100, %s102
      %p106 = scmp.eq.s32.totalorder %s19, 0
      %p107 = por %p105, %p106
      %p108 = scmp.ne.s32.totalorder %s100, %s102
      %p109 = scmp.eq.s32.totalorder %s24, 1
      %p110 = por %p108, %p109
      %p111 = scmp.ne.s32.totalorder %s102, %s103
      %p112 = scmp.eq.s32.totalorder %s24, 0
      %p113 = por %p111, %p112
      %p114 = scmp.ne.s32.totalorder %s102, %s103
      %p115 = scmp.eq.s32.totalorder %s25, 1
      %p116 = por %p114, %p115
      %p118 = scmp.ne.s32.totalorder %s103, %s117
      %p119 = scmp.eq.s32.totalorder %s25, 0
      %p120 = por %p118, %p119
      %s121 = ssub.s32 %s19, %s26
      %p122 = scmp.eq.s32.totalorder %s121, 0
      %s124 = sadd.s32 %s123, 1
      %s125 = scalar_select %p122, %s123, %s124
      %p128 = pneg %p122
      %p129 = scmp.eq.s32.totalorder %s19, 1
      %p130 = por %p128, %p129
      %p131 = scmp.ne.s32.totalorder %s123, %s126
      %p132 = scmp.eq.s32.totalorder %s19, 0
      %p133 = por %p131, %p132
      %p134 = scmp.ne.s32.totalorder %s123, %s126
      %p135 = scmp.eq.s32.totalorder %s24, 1
      %p136 = por %p134, %p135
      %p137 = scmp.ne.s32.totalorder %s126, %s127
      %p138 = scmp.eq.s32.totalorder %s24, 0
      %p139 = por %p137, %p138
      %p140 = scmp.ne.s32.totalorder %s126, %s127
      %p141 = scmp.eq.s32.totalorder %s25, 1
      %p142 = por %p140, %p141
      %p144 = scmp.ne.s32.totalorder %s127, %s143
      %p145 = scmp.eq.s32.totalorder %s25, 0
      %p146 = por %p144, %p145
      %p147 = scmp.le.s32.totalorder 1, %s19
      %p148 = scmp.lt.s32.totalorder %s19, 3
      %p149 = pnand %p147, %p148
      %p150 = pneg %p149
      // Predicated region
      $region9: #{tpu_custom_call.1} parent=5 // pred_check
        _
      $region10: #{tpu_custom_call.1} parent=5 // pred_check_branch
        %152 = sbr.rel (%p149) target = $region12
      $region11: #{tpu_custom_call.1} parent=5 // pred_region
        %s153 = ssub.s32 %s19, 1
        // Predicated region
        $region13: #{tpu_custom_call.1} parent=11 // pred_check
          %p154 = pneg %p92
        $region14: #{tpu_custom_call.1} parent=11 // pred_check_branch
          %156 = sbr.rel (%p154) target = $region16
        $region15: #{tpu_custom_call.1} parent=11 // pred_region
          _
        $region16: #{tpu_custom_call.1} parent=11 // pred_fallthru
          _
        // Predicated region
        $region17: #{tpu_custom_call.1} parent=11 // pred_check
          %p157 = pneg %p113
        $region18: #{tpu_custom_call.1} parent=11 // pred_check_branch
          %159 = sbr.rel (%p157) target = $region20
        $region19: #{tpu_custom_call.1} parent=11 // pred_region
          _
        $region20: #{tpu_custom_call.1} parent=11 // pred_fallthru
          _
      $region12: #{tpu_custom_call.1} parent=5 // pred_fallthru
        _
      %p160 = scmp.lt.s32.totalorder %s19, 2
      // Predicated region
      $region21: #{tpu_custom_call.1} parent=5 // pred_check
        %p161 = pneg %p160
      $region22: #{tpu_custom_call.1} parent=5 // pred_check_branch
        %163 = sbr.rel (%p161) target = $region24
      $region23: #{tpu_custom_call.1} parent=5 // pred_region
        // Predicated region
        $region25: #{tpu_custom_call.1} parent=23 // pred_check
          %p164 = pneg %p39
        $region26: #{tpu_custom_call.1} parent=23 // pred_check_branch
          %166 = sbr.rel (%p164) target = $region28
        $region27: #{tpu_custom_call.1} parent=23 // pred_region
          %s167 = sand.u32 %s29, 1
          %s168 = scalar_lea.sflag [#allocation4], %s167
          %s169 = sand.u32 %s29, 1
          %s170 = smul.addr %s169, 32
          %s171 = scalar_lea.vmem [#allocation3], %s170
          %173 = vsyncadd %s168, 0
          %s174 = smul.addr %s19, 8
          %s175 = smul.addr %s174, 4
          %s176 = scalar_lea.hbm %s0, %s175
          %s177 = sshll.u32 %s176, 4
          %s178 = int_to_ptr.hbm [resolvable:$true] %s177
          %s179 = sshll.u32 %s171, 4
          %s180 = int_to_ptr.vmem [resolvable:$true] %s179
          %185 = dma.hbm_to_vmem [thread:$0]  %s178, 512, %s180, %s168, 256, 256, 16
        $region28: #{tpu_custom_call.1} parent=23 // pred_fallthru
          _
        // Predicated region
        $region29: #{tpu_custom_call.1} parent=23 // pred_check
          %p186 = pneg %p65
        $region30: #{tpu_custom_call.1} parent=23 // pred_check_branch
          %188 = sbr.rel (%p186) target = $region32
        $region31: #{tpu_custom_call.1} parent=23 // pred_region
          %s189 = sand.u32 %s55, 1
          %s190 = scalar_lea.sflag [#allocation7], %s189
          %s191 = sand.u32 %s55, 1
          %s192 = smul.addr %s191, 16
          %s193 = scalar_lea.vmem [#allocation6], %s192
          %195 = vsyncadd %s190, 0
          %s196 = smul.addr %s19, 4
          %s197 = smul.addr %s196, 4
          %s198 = scalar_lea.hbm %s1, %s197
          %s200 = sshll.u32 %s198, 4
          %s201 = int_to_ptr.hbm [resolvable:$true] %s200
          %s202 = sshll.u32 %s193, 4
          %s203 = int_to_ptr.vmem [resolvable:$true] %s202
          %205 = dma.hbm_to_vmem [thread:$0]  %s201, 256, %s203, %s190
        $region32: #{tpu_custom_call.1} parent=23 // pred_fallthru
          _
      $region24: #{tpu_custom_call.1} parent=5 // pred_fallthru
        _
      %p206 = scmp.le.s32.totalorder 1, %s19
      %p207 = scmp.lt.s32.totalorder %s19, 3
      %p208 = pnand %p206, %p207
      %p209 = pneg %p208
      // Predicated region
      $region33: #{tpu_custom_call.1} parent=5 // pred_check
        _
      $region34: #{tpu_custom_call.1} parent=5 // pred_check_branch
        %211 = sbr.rel (%p208) target = $region36
      $region35: #{tpu_custom_call.1} parent=5 // pred_region
        %s212 = ssub.s32 %s19, 1
        %s213 = sand.u32 %s32, 1
        %s214 = scalar_lea.sflag [#allocation4], %s213
        %s215 = sand.u32 %s32, 1
        %s216 = smul.addr %s215, 32
        %s217 = scalar_lea.vmem [#allocation3], %s216
        // Predicated region
        $region37: #{tpu_custom_call.1} parent=35 // pred_check
          %p218 = pneg %p45
        $region38: #{tpu_custom_call.1} parent=35 // pred_check_branch
          %220 = sbr.rel (%p218) target = $region40
        $region39: #{tpu_custom_call.1} parent=35 // pred_region
          %222 = dma.done %s214, 512
        $region40: #{tpu_custom_call.1} parent=35 // pred_fallthru
          _
        %s223 = sand.u32 %s58, 1
        %s224 = scalar_lea.sflag [#allocation7], %s223
        %s225 = sand.u32 %s58, 1
        %s226 = smul.addr %s225, 16
        %s227 = scalar_lea.vmem [#allocation6], %s226
        // Predicated region
        $region41: #{tpu_custom_call.1} parent=35 // pred_check
          %p228 = pneg %p71
        $region42: #{tpu_custom_call.1} parent=35 // pred_check_branch
          %230 = sbr.rel (%p228) target = $region44
        $region43: #{tpu_custom_call.1} parent=35 // pred_region
          %232 = dma.done %s224, 256
        $region44: #{tpu_custom_call.1} parent=35 // pred_fallthru
          _
        %s233 = sand.u32 %s32, 1
        %s234 = scalar_lea.sflag [#allocation4], %s233
        %s235 = sand.u32 %s32, 1
        %s236 = smul.addr %s235, 32
        %s237 = scalar_lea.vmem [#allocation3], %s236
        %p238 = pneg %p45
        %p239 = pneg %p42
        %s240 = sand.u32 %s58, 1
        %s241 = scalar_lea.sflag [#allocation7], %s240
        %s242 = sand.u32 %s58, 1
        %s243 = smul.addr %s242, 16
        %s244 = scalar_lea.vmem [#allocation6], %s243
        %p245 = pneg %p71
        %p246 = pneg %p68
        %p247 = pneg %p92
        %p248 = pneg %p89
        %p249 = pneg %p113
        %p250 = pneg %p110
        %p251 = pneg %p139
        %p252 = pneg %p136
        %s253 = sand.u32 %s126, 1
        %s254 = scalar_lea.sflag [#allocation5], %s253
        %s255 = sand.u32 %s126, 1
        %s256 = smul.addr %s255, 24
        %s257 = scalar_lea.vmem [#allocation8], %s256
        %v259 = vld [vmem:[%s3] sm:$0xff]
        %v260 = vld [vmem:[%s217] sm:$0xff]
        %v261 = vld [vmem:[%s217 + $0x8] sm:$0xf]
        %v262 = vld [vmem:[%s217 + $0x10] sm:$0xff]
        %v263 = vld [vmem:[%s217 + $0x18] sm:$0xf]
        %264 = vst [vmem:[#allocation2] sm:$0xff] %v260
        %265 = vst [vmem:[#allocation2 + $0x8] sm:$0xf] %v261
        %266 = vst [vmem:[#allocation2 + $0xc] sm:$0xff] %v262
        %267 = vst [vmem:[#allocation2 + $0x14] sm:$0xf] %v263
        %v268 = vld [vmem:[%s217] sm:$0xff]
        %v269 = vld [vmem:[%s217 + $0x8] sm:$0xff]
        %v270 = vld [vmem:[%s217 + $0x10] sm:$0xff]
        %v271 = vld [vmem:[%s217 + $0x18] sm:$0xff]
        %276 = vrot.lane.b32.xlu0 %v268, 127
        %v277 = vpop.permute.xlu0 %276
        %278 = vrot.lane.b32.xlu0 %v269, 127
        %v279 = vpop.permute.xlu0 %278
        %280 = vrot.lane.b32.xlu0 %v270, 127
        %v281 = vpop.permute.xlu0 %280
        %282 = vrot.lane.b32.xlu0 %v271, 127
        %v283 = vpop.permute.xlu0 %282
        %v284 = vrot.slane %v277, 4
        %v285 = vrot.slane %v279, 4
        %v286 = vrot.slane %v281, 4
        %v287 = vrot.slane %v283, 4
        %vm288 = vcmask 1043456
        %v289 = vsel %vm288, %v284, %v285
        %vm290 = vcmask 1039360
        %v291 = vsel %vm290, %v277, %v289
        %v292 = vsel %vm290, %v279, %v285
        %v293 = vsel %vm288, %v286, %v287
        %v294 = vsel %vm290, %v281, %v293
        %v295 = vsel %vm290, %v283, %v287
        %300 = vst [vmem:[#allocation2 + $0x18] sm:$0xff] %v291
        %301 = vst [vmem:[#allocation2 + $0x20] sm:$0xf] %v292
        %302 = vst [vmem:[#allocation2 + $0x24] sm:$0xff] %v294
        %303 = vst [vmem:[#allocation2 + $0x2c] sm:$0xf] %v295
        %v304 = vld [vmem:[%s217] sm:$0xff]
        %v305 = vld [vmem:[%s217 + $0x8] sm:$0xff]
        %v306 = vld [vmem:[%s217 + $0x10] sm:$0xff]
        %v307 = vld [vmem:[%s217 + $0x18] sm:$0xff]
        %312 = vrot.lane.b32.xlu0 %v304, 126
        %v313 = vpop.permute.xlu0 %312
        %314 = vrot.lane.b32.xlu0 %v305, 126
        %v315 = vpop.permute.xlu0 %314
        %316 = vrot.lane.b32.xlu0 %v306, 126
        %v317 = vpop.permute.xlu0 %316
        %318 = vrot.lane.b32.xlu0 %v307, 126
        %v319 = vpop.permute.xlu0 %318
        %v320 = vrot.slane %v313, 4
        %v321 = vrot.slane %v315, 4
        %v322 = vrot.slane %v317, 4
        %v323 = vrot.slane %v319, 4
        %v324 = vsel %vm288, %v320, %v321
        %vm325 = vcmask 1031168
        %v326 = vsel %vm325, %v313, %v324
        %v327 = vsel %vm325, %v315, %v321
        %v328 = vsel %vm288, %v322, %v323
        %v329 = vsel %vm325, %v317, %v328
        %v330 = vsel %vm325, %v319, %v323
        %335 = vst [vmem:[#allocation2 + $0x30] sm:$0xff] %v326
        %336 = vst [vmem:[#allocation2 + $0x38] sm:$0xf] %v327
        %337 = vst [vmem:[#allocation2 + $0x3c] sm:$0xff] %v329
        %338 = vst [vmem:[#allocation2 + $0x44] sm:$0xf] %v330
        %v339 = vld [vmem:[%s217] sm:$0xff]
        %v340 = vld [vmem:[%s217 + $0x8] sm:$0xff]
        %v341 = vld [vmem:[%s217 + $0x10] sm:$0xff]
        %v342 = vld [vmem:[%s217 + $0x18] sm:$0xff]
        %347 = vrot.lane.b32.xlu0 %v339, 104
        %v348 = vpop.permute.xlu0 %347
        %349 = vrot.lane.b32.xlu0 %v340, 104
        %v350 = vpop.permute.xlu0 %349
        %351 = vrot.lane.b32.xlu0 %v341, 104
        %v352 = vpop.permute.xlu0 %351
        %353 = vrot.lane.b32.xlu0 %v342, 104
        %v354 = vpop.permute.xlu0 %353
        %v355 = vrot.slane %v348, 4
        %v356 = vrot.slane %v350, 4
        %v357 = vrot.slane %v352, 4
        %v358 = vrot.slane %v354, 4
        %v359 = vsel %vm288, %v355, %v356
        %vm360 = vcmask 850944
        %v361 = vsel %vm360, %v348, %v359
        %v362 = vsel %vm360, %v350, %v356
        %v363 = vsel %vm288, %v357, %v358
        %v364 = vsel %vm360, %v352, %v363
        %v365 = vsel %vm360, %v354, %v358
        %370 = vst [vmem:[#allocation2 + $0x48] sm:$0xff] %v361
        %371 = vst [vmem:[#allocation2 + $0x50] sm:$0xf] %v362
        %372 = vst [vmem:[#allocation2 + $0x54] sm:$0xff] %v364
        %373 = vst [vmem:[#allocation2 + $0x5c] sm:$0xf] %v365
        %v374 = vld [vmem:[%s217] sm:$0xff]
        %v375 = vld [vmem:[%s217 + $0x8] sm:$0xff]
        %v376 = vld [vmem:[%s217 + $0x10] sm:$0xff]
        %v377 = vld [vmem:[%s217 + $0x18] sm:$0xff]
        %382 = vrot.lane.b32.xlu0 %v374, 103
        %v383 = vpop.permute.xlu0 %382
        %384 = vrot.lane.b32.xlu0 %v375, 103
        %v385 = vpop.permute.xlu0 %384
        %386 = vrot.lane.b32.xlu0 %v376, 103
        %v387 = vpop.permute.xlu0 %386
        %388 = vrot.lane.b32.xlu0 %v377, 103
        %v389 = vpop.permute.xlu0 %388
        %v390 = vrot.slane %v383, 4
        %v391 = vrot.slane %v385, 4
        %v392 = vrot.slane %v387, 4
        %v393 = vrot.slane %v389, 4
        %v394 = vsel %vm288, %v390, %v391
        %vm395 = vcmask 842752
        %v396 = vsel %vm395, %v383, %v394
        %v397 = vsel %vm395, %v385, %v391
        %v398 = vsel %vm288, %v392, %v393
        %v399 = vsel %vm395, %v387, %v398
        %v400 = vsel %vm395, %v389, %v393
        %405 = vst [vmem:[#allocation2 + $0x60] sm:$0xff] %v396
        %406 = vst [vmem:[#allocation2 + $0x68] sm:$0xf] %v397
        %407 = vst [vmem:[#allocation2 + $0x6c] sm:$0xff] %v399
        %408 = vst [vmem:[#allocation2 + $0x74] sm:$0xf] %v400
        %v409 = vld [vmem:[%s217] sm:$0xff]
        %v410 = vld [vmem:[%s217 + $0x8] sm:$0xff]
        %v411 = vld [vmem:[%s217 + $0x10] sm:$0xff]
        %v412 = vld [vmem:[%s217 + $0x18] sm:$0xff]
        %417 = vrot.lane.b32.xlu0 %v409, 102
        %v418 = vpop.permute.xlu0 %417
        %419 = vrot.lane.b32.xlu0 %v410, 102
        %v420 = vpop.permute.xlu0 %419
        %421 = vrot.lane.b32.xlu0 %v411, 102
        %v422 = vpop.permute.xlu0 %421
        %423 = vrot.lane.b32.xlu0 %v412, 102
        %v424 = vpop.permute.xlu0 %423
        %v425 = vrot.slane %v418, 4
        %v426 = vrot.slane %v420, 4
        %v427 = vrot.slane %v422, 4
        %v428 = vrot.slane %v424, 4
        %v429 = vsel %vm288, %v425, %v426
        %vm430 = vcmask 834560
        %v431 = vsel %vm430, %v418, %v429
        %v432 = vsel %vm430, %v420, %v426
        %v433 = vsel %vm288, %v427, %v428
        %v434 = vsel %vm430, %v422, %v433
        %v435 = vsel %vm430, %v424, %v428
        %440 = vst [vmem:[#allocation2 + $0x78] sm:$0xff] %v431
        %441 = vst [vmem:[#allocation2 + $0x80] sm:$0xf] %v432
        %442 = vst [vmem:[#allocation2 + $0x84] sm:$0xff] %v434
        %443 = vst [vmem:[#allocation2 + $0x8c] sm:$0xf] %v435
        %v444 = vld [vmem:[%s217] sm:$0xff]
        %v445 = vld [vmem:[%s217 + $0x8] sm:$0xff]
        %v446 = vld [vmem:[%s217 + $0x10] sm:$0xff]
        %v447 = vld [vmem:[%s217 + $0x18] sm:$0xff]
        %452 = vrot.lane.b32.xlu0 %v444, 80
        %v453 = vpop.permute.xlu0 %452
        %454 = vrot.lane.b32.xlu0 %v445, 80
        %v455 = vpop.permute.xlu0 %454
        %456 = vrot.lane.b32.xlu0 %v446, 80
        %v457 = vpop.permute.xlu0 %456
        %458 = vrot.lane.b32.xlu0 %v447, 80
        %v459 = vpop.permute.xlu0 %458
        %v460 = vrot.slane %v453, 4
        %v461 = vrot.slane %v455, 4
        %v462 = vrot.slane %v457, 4
        %v463 = vrot.slane %v459, 4
        %v464 = vsel %vm288, %v460, %v461
        %vm465 = vcmask 654336
        %v466 = vsel %vm465, %v453, %v464
        %v467 = vsel %vm465, %v455, %v461
        %v468 = vsel %vm288, %v462, %v463
        %v469 = vsel %vm465, %v457, %v468
        %v470 = vsel %vm465, %v459, %v463
        %475 = vst [vmem:[#allocation2 + $0x90] sm:$0xff] %v466
        %476 = vst [vmem:[#allocation2 + $0x98] sm:$0xf] %v467
        %477 = vst [vmem:[#allocation2 + $0x9c] sm:$0xff] %v469
        %478 = vst [vmem:[#allocation2 + $0xa4] sm:$0xf] %v470
        %v479 = vld [vmem:[%s217] sm:$0xff]
        %v480 = vld [vmem:[%s217 + $0x8] sm:$0xff]
        %v481 = vld [vmem:[%s217 + $0x10] sm:$0xff]
        %v482 = vld [vmem:[%s217 + $0x18] sm:$0xff]
        %487 = vrot.lane.b32.xlu0 %v479, 79
        %v488 = vpop.permute.xlu0 %487
        %489 = vrot.lane.b32.xlu0 %v480, 79
        %v490 = vpop.permute.xlu0 %489
        %491 = vrot.lane.b32.xlu0 %v481, 79
        %v492 = vpop.permute.xlu0 %491
        %493 = vrot.lane.b32.xlu0 %v482, 79
        %v494 = vpop.permute.xlu0 %493
        %v495 = vrot.slane %v488, 4
        %v496 = vrot.slane %v490, 4
        %v497 = vrot.slane %v492, 4
        %v498 = vrot.slane %v494, 4
        %v499 = vsel %vm288, %v495, %v496
        %vm500 = vcmask 646144
        %v501 = vsel %vm500, %v488, %v499
        %v502 = vsel %vm500, %v490, %v496
        %v503 = vsel %vm288, %v497, %v498
        %v504 = vsel %vm500, %v492, %v503
        %v505 = vsel %vm500, %v494, %v498
        %510 = vst [vmem:[#allocation2 + $0xa8] sm:$0xff] %v501
        %511 = vst [vmem:[#allocation2 + $0xb0] sm:$0xf] %v502
        %512 = vst [vmem:[#allocation2 + $0xb4] sm:$0xff] %v504
        %513 = vst [vmem:[#allocation2 + $0xbc] sm:$0xf] %v505
        %v514 = vld [vmem:[%s217] sm:$0xff]
        %v515 = vld [vmem:[%s217 + $0x8] sm:$0xff]
        %v516 = vld [vmem:[%s217 + $0x10] sm:$0xff]
        %v517 = vld [vmem:[%s217 + $0x18] sm:$0xff]
        %522 = vrot.lane.b32.xlu0 %v514, 78
        %v523 = vpop.permute.xlu0 %522
        %524 = vrot.lane.b32.xlu0 %v515, 78
        %v525 = vpop.permute.xlu0 %524
        %526 = vrot.lane.b32.xlu0 %v516, 78
        %v527 = vpop.permute.xlu0 %526
        %528 = vrot.lane.b32.xlu0 %v517, 78
        %v529 = vpop.permute.xlu0 %528
        %v530 = vrot.slane %v523, 4
        %v531 = vrot.slane %v525, 4
        %v532 = vrot.slane %v527, 4
        %v533 = vrot.slane %v529, 4
        %v534 = vsel %vm288, %v530, %v531
        %vm535 = vcmask 637952
        %v536 = vsel %vm535, %v523, %v534
        %v537 = vsel %vm535, %v525, %v531
        %v538 = vsel %vm288, %v532, %v533
        %v539 = vsel %vm535, %v527, %v538
        %v540 = vsel %vm535, %v529, %v533
        %545 = vst [vmem:[#allocation2 + $0xc0] sm:$0xff] %v536
        %546 = vst [vmem:[#allocation2 + $0xc8] sm:$0xf] %v537
        %547 = vst [vmem:[#allocation2 + $0xcc] sm:$0xff] %v539
        %548 = vst [vmem:[#allocation2 + $0xd4] sm:$0xf] %v540
        %v549 = vld [vmem:[%s227] sm:$0xff]
        %v550 = vld [vmem:[%s227 + $0x8] sm:$0xf]
        %551 = vst [vmem:[#allocation2 + $0xd8] sm:$0xff] %v549
        %552 = vst [vmem:[#allocation2 + $0xe0] sm:$0xf] %v550
        %v553 = vld [vmem:[%s227] sm:$0xff]
        %v554 = vld [vmem:[%s227 + $0x8] sm:$0xff]
        %557 = vrot.lane.b32.xlu0 %v553, 127
        %v558 = vpop.permute.xlu0 %557
        %559 = vrot.lane.b32.xlu0 %v554, 127
        %v560 = vpop.permute.xlu0 %559
        %v561 = vrot.slane %v558, 4
        %v562 = vrot.slane %v560, 4
        %v563 = vsel %vm288, %v561, %v562
        %v564 = vsel %vm290, %v558, %v563
        %v565 = vsel %vm290, %v560, %v562
        %568 = vst [vmem:[#allocation2 + $0xe4] sm:$0xff] %v564
        %569 = vst [vmem:[#allocation2 + $0xec] sm:$0xf] %v565
        %v570 = vld [vmem:[%s227] sm:$0xff]
        %v571 = vld [vmem:[%s227 + $0x8] sm:$0xff]
        %574 = vrot.lane.b32.xlu0 %v570, 126
        %v575 = vpop.permute.xlu0 %574
        %576 = vrot.lane.b32.xlu0 %v571, 126
        %v577 = vpop.permute.xlu0 %576
        %v578 = vrot.slane %v575, 4
        %v579 = vrot.slane %v577, 4
        %v580 = vsel %vm288, %v578, %v579
        %v581 = vsel %vm325, %v575, %v580
        %v582 = vsel %vm325, %v577, %v579
        %585 = vst [vmem:[#allocation2 + $0xf0] sm:$0xff] %v581
        %586 = vst [vmem:[#allocation2 + $0xf8] sm:$0xf] %v582
        %v587 = vld [vmem:[%s227] sm:$0xff]
        %v588 = vld [vmem:[%s227 + $0x8] sm:$0xff]
        %591 = vrot.lane.b32.xlu0 %v587, 104
        %v592 = vpop.permute.xlu0 %591
        %593 = vrot.lane.b32.xlu0 %v588, 104
        %v594 = vpop.permute.xlu0 %593
        %v595 = vrot.slane %v592, 4
        %v596 = vrot.slane %v594, 4
        %v597 = vsel %vm288, %v595, %v596
        %v598 = vsel %vm360, %v592, %v597
        %v599 = vsel %vm360, %v594, %v596
        %602 = vst [vmem:[#allocation2 + $0xfc] sm:$0xff] %v598
        %603 = vst [vmem:[#allocation2 + $0x104] sm:$0xf] %v599
        %v604 = vld [vmem:[%s227] sm:$0xff]
        %v605 = vld [vmem:[%s227 + $0x8] sm:$0xff]
        %608 = vrot.lane.b32.xlu0 %v604, 103
        %v609 = vpop.permute.xlu0 %608
        %610 = vrot.lane.b32.xlu0 %v605, 103
        %v611 = vpop.permute.xlu0 %610
        %v612 = vrot.slane %v609, 4
        %v613 = vrot.slane %v611, 4
        %v614 = vsel %vm288, %v612, %v613
        %v615 = vsel %vm395, %v609, %v614
        %v616 = vsel %vm395, %v611, %v613
        %619 = vst [vmem:[#allocation2 + $0x108] sm:$0xff] %v615
        %620 = vst [vmem:[#allocation2 + $0x110] sm:$0xf] %v616
        %v621 = vld [vmem:[%s227] sm:$0xff]
        %v622 = vld [vmem:[%s227 + $0x8] sm:$0xff]
        %625 = vrot.lane.b32.xlu0 %v621, 102
        %v626 = vpop.permute.xlu0 %625
        %627 = vrot.lane.b32.xlu0 %v622, 102
        %v628 = vpop.permute.xlu0 %627
        %v629 = vrot.slane %v626, 4
        %v630 = vrot.slane %v628, 4
        %v631 = vsel %vm288, %v629, %v630
        %v632 = vsel %vm430, %v626, %v631
        %v633 = vsel %vm430, %v628, %v630
        %636 = vst [vmem:[#allocation2 + $0x114] sm:$0xff] %v632
        %637 = vst [vmem:[#allocation2 + $0x11c] sm:$0xf] %v633
        %v638 = vld [vmem:[%s227] sm:$0xff]
        %v639 = vld [vmem:[%s227 + $0x8] sm:$0xff]
        %642 = vrot.lane.b32.xlu0 %v638, 80
        %v643 = vpop.permute.xlu0 %642
        %644 = vrot.lane.b32.xlu0 %v639, 80
        %v645 = vpop.permute.xlu0 %644
        %v646 = vrot.slane %v643, 4
        %v647 = vrot.slane %v645, 4
        %v648 = vsel %vm288, %v646, %v647
        %v649 = vsel %vm465, %v643, %v648
        %v650 = vsel %vm465, %v645, %v647
        %653 = vst [vmem:[#allocation2 + $0x120] sm:$0xff] %v649
        %654 = vst [vmem:[#allocation2 + $0x128] sm:$0xf] %v650
        %v655 = vld [vmem:[%s227] sm:$0xff]
        %v656 = vld [vmem:[%s227 + $0x8] sm:$0xff]
        %659 = vrot.lane.b32.xlu0 %v655, 79
        %v660 = vpop.permute.xlu0 %659
        %661 = vrot.lane.b32.xlu0 %v656, 79
        %v662 = vpop.permute.xlu0 %661
        %v663 = vrot.slane %v660, 4
        %v664 = vrot.slane %v662, 4
        %v665 = vsel %vm288, %v663, %v664
        %v666 = vsel %vm500, %v660, %v665
        %v667 = vsel %vm500, %v662, %v664
        %670 = vst [vmem:[#allocation2 + $0x12c] sm:$0xff] %v666
        %671 = vst [vmem:[#allocation2 + $0x134] sm:$0xf] %v667
        %v672 = vld [vmem:[%s227] sm:$0xff]
        %v673 = vld [vmem:[%s227 + $0x8] sm:$0xff]
        %676 = vrot.lane.b32.xlu0 %v672, 78
        %v677 = vpop.permute.xlu0 %676
        %678 = vrot.lane.b32.xlu0 %v673, 78
        %v679 = vpop.permute.xlu0 %678
        %v680 = vrot.slane %v677, 4
        %v681 = vrot.slane %v679, 4
        %v682 = vsel %vm288, %v680, %v681
        %v683 = vsel %vm535, %v677, %v682
        %v684 = vsel %vm535, %v679, %v681
        %687 = vst [vmem:[#allocation2 + $0x138] sm:$0xff] %v683
        %688 = vst [vmem:[#allocation2 + $0x140] sm:$0xf] %v684
        %v689 = vld [vmem:[%s2] sm:$0xff]
        %v690 = vld [vmem:[#allocation2] sm:$0xff]
        %v691 = vld [vmem:[#allocation2 + $0x8] sm:$0xf]
        %v692 = vld [vmem:[#allocation2 + $0xc] sm:$0xff]
        %v693 = vld [vmem:[#allocation2 + $0x14] sm:$0xf]
        %v694 = vld [vmem:[#allocation2 + $0x18] sm:$0xff]
        %v695 = vld [vmem:[#allocation2 + $0x20] sm:$0xf]
        %v696 = vld [vmem:[#allocation2 + $0x24] sm:$0xff]
        %v697 = vld [vmem:[#allocation2 + $0x2c] sm:$0xf]
        %v698 = vld [vmem:[#allocation2 + $0x30] sm:$0xff]
        %v699 = vld [vmem:[#allocation2 + $0x38] sm:$0xf]
        %v700 = vld [vmem:[#allocation2 + $0x3c] sm:$0xff]
        %v701 = vld [vmem:[#allocation2 + $0x44] sm:$0xf]
        %v702 = vld [vmem:[#allocation2 + $0x48] sm:$0xff]
        %v703 = vld [vmem:[#allocation2 + $0x50] sm:$0xf]
        %v704 = vld [vmem:[#allocation2 + $0x54] sm:$0xff]
        %v705 = vld [vmem:[#allocation2 + $0x5c] sm:$0xf]
        %v706 = vld [vmem:[#allocation2 + $0x60] sm:$0xff]
        %v707 = vld [vmem:[#allocation2 + $0x68] sm:$0xf]
        %v708 = vld [vmem:[#allocation2 + $0x6c] sm:$0xff]
        %v709 = vld [vmem:[#allocation2 + $0x74] sm:$0xf]
        %v710 = vld [vmem:[#allocation2 + $0x78] sm:$0xff]
        %v711 = vld [vmem:[#allocation2 + $0x80] sm:$0xf]
        %v712 = vld [vmem:[#allocation2 + $0x84] sm:$0xff]
        %v713 = vld [vmem:[#allocation2 + $0x8c] sm:$0xf]
        %v714 = vld [vmem:[#allocation2 + $0x90] sm:$0xff]
        %v715 = vld [vmem:[#allocation2 + $0x98] sm:$0xf]
        %v716 = vld [vmem:[#allocation2 + $0x9c] sm:$0xff]
        %v717 = vld [vmem:[#allocation2 + $0xa4] sm:$0xf]
        %v718 = vld [vmem:[#allocation2 + $0xa8] sm:$0xff]
        %v719 = vld [vmem:[#allocation2 + $0xb0] sm:$0xf]
        %v720 = vld [vmem:[#allocation2 + $0xb4] sm:$0xff]
        %v721 = vld [vmem:[#allocation2 + $0xbc] sm:$0xf]
        %v722 = vld [vmem:[#allocation2 + $0xc0] sm:$0xff]
        %v723 = vld [vmem:[#allocation2 + $0xc8] sm:$0xf]
        %v724 = vld [vmem:[#allocation2 + $0xcc] sm:$0xff]
        %v725 = vld [vmem:[#allocation2 + $0xd4] sm:$0xf]
        %v726 = vld [vmem:[#allocation2 + $0xd8] sm:$0xff]
        %v727 = vld [vmem:[#allocation2 + $0xe0] sm:$0xf]
        %v728 = vld [vmem:[#allocation2 + $0xe4] sm:$0xff]
        %v729 = vld [vmem:[#allocation2 + $0xec] sm:$0xf]
        %v730 = vld [vmem:[#allocation2 + $0xf0] sm:$0xff]
        %v731 = vld [vmem:[#allocation2 + $0xf8] sm:$0xf]
        %v732 = vld [vmem:[#allocation2 + $0xfc] sm:$0xff]
        %v733 = vld [vmem:[#allocation2 + $0x104] sm:$0xf]
        %v734 = vld [vmem:[#allocation2 + $0x108] sm:$0xff]
        %v735 = vld [vmem:[#allocation2 + $0x110] sm:$0xf]
        %v736 = vld [vmem:[#allocation2 + $0x114] sm:$0xff]
        %v737 = vld [vmem:[#allocation2 + $0x11c] sm:$0xf]
        %v738 = vld [vmem:[#allocation2 + $0x120] sm:$0xff]
        %v739 = vld [vmem:[#allocation2 + $0x128] sm:$0xf]
        %v740 = vld [vmem:[#allocation2 + $0x12c] sm:$0xff]
        %v741 = vld [vmem:[#allocation2 + $0x134] sm:$0xf]
        %v742 = vld [vmem:[#allocation2 + $0x138] sm:$0xff]
        %v743 = vld [vmem:[#allocation2 + $0x140] sm:$0xf]
        %745 = vset.pattern.permute.xlu0 0
        %746 = vperm.xlu0 %745, %v259
        %v747 = vpop.permute.xlu0 %746
        %v750 = vunpack.c.l.b16 %v689
        %v751 = vunpack.c.h.b16 %v689
        %v752 = vpack.c.b16 %v750, %v750
        %v753 = vpack.c.b16 %v751, %v751
        %v809 = vunpack.c.l.b16 %v690
        %v810 = vunpack.c.h.b16 %v690
        %v811 = vunpack.c.l.b16 %v691
        %v812 = vunpack.c.l.b16 %v692
        %v813 = vunpack.c.h.b16 %v692
        %v814 = vunpack.c.l.b16 %v693
        %v815 = vunpack.c.l.b16 %v694
        %v816 = vunpack.c.h.b16 %v694
        %v817 = vunpack.c.l.b16 %v695
        %v818 = vunpack.c.l.b16 %v696
        %v819 = vunpack.c.h.b16 %v696
        %v820 = vunpack.c.l.b16 %v697
        %v821 = vunpack.c.l.b16 %v698
        %v822 = vunpack.c.h.b16 %v698
        %v823 = vunpack.c.l.b16 %v699
        %v824 = vunpack.c.l.b16 %v700
        %v825 = vunpack.c.h.b16 %v700
        %v826 = vunpack.c.l.b16 %v701
        %v827 = vunpack.c.l.b16 %v702
        %v828 = vunpack.c.h.b16 %v702
        %v829 = vunpack.c.l.b16 %v703
        %v830 = vunpack.c.l.b16 %v704
        %v831 = vunpack.c.h.b16 %v704
        %v832 = vunpack.c.l.b16 %v705
        %v833 = vunpack.c.l.b16 %v706
        %v834 = vunpack.c.h.b16 %v706
        %v835 = vunpack.c.l.b16 %v707
        %v836 = vunpack.c.l.b16 %v708
        %v837 = vunpack.c.h.b16 %v708
        %v838 = vunpack.c.l.b16 %v709
        %v839 = vunpack.c.l.b16 %v710
        %v840 = vunpack.c.h.b16 %v710
        %v841 = vunpack.c.l.b16 %v711
        %v842 = vunpack.c.l.b16 %v712
        %v843 = vunpack.c.h.b16 %v712
        %v844 = vunpack.c.l.b16 %v713
        %v845 = vunpack.c.l.b16 %v714
        %v846 = vunpack.c.h.b16 %v714
        %v847 = vunpack.c.l.b16 %v715
        %v848 = vunpack.c.l.b16 %v716
        %v849 = vunpack.c.h.b16 %v716
        %v850 = vunpack.c.l.b16 %v717
        %v851 = vunpack.c.l.b16 %v718
        %v852 = vunpack.c.h.b16 %v718
        %v853 = vunpack.c.l.b16 %v719
        %v854 = vunpack.c.l.b16 %v720
        %v855 = vunpack.c.h.b16 %v720
        %v856 = vunpack.c.l.b16 %v721
        %v857 = vunpack.c.l.b16 %v722
        %v858 = vunpack.c.h.b16 %v722
        %v859 = vunpack.c.l.b16 %v723
        %v860 = vunpack.c.l.b16 %v724
        %v861 = vunpack.c.h.b16 %v724
        %v862 = vunpack.c.l.b16 %v725
        %v863 = vunpack.c.l.b16 %v726
        %v864 = vunpack.c.h.b16 %v726
        %v865 = vunpack.c.l.b16 %v727
        %v866 = vunpack.c.l.b16 %v728
        %v867 = vunpack.c.h.b16 %v728
        %v868 = vunpack.c.l.b16 %v729
        %v869 = vunpack.c.l.b16 %v730
        %v870 = vunpack.c.h.b16 %v730
        %v871 = vunpack.c.l.b16 %v731
        %v872 = vunpack.c.l.b16 %v732
        %v873 = vunpack.c.h.b16 %v732
        %v874 = vunpack.c.l.b16 %v733
        %v875 = vunpack.c.l.b16 %v734
        %v876 = vunpack.c.h.b16 %v734
        %v877 = vunpack.c.l.b16 %v735
        %v878 = vunpack.c.l.b16 %v736
        %v879 = vunpack.c.h.b16 %v736
        %v880 = vunpack.c.l.b16 %v737
        %v881 = vunpack.c.l.b16 %v738
        %v882 = vunpack.c.h.b16 %v738
        %v883 = vunpack.c.l.b16 %v739
        %v884 = vunpack.c.l.b16 %v740
        %v885 = vunpack.c.h.b16 %v740
        %v886 = vunpack.c.l.b16 %v741
        %v887 = vunpack.c.l.b16 %v742
        %v888 = vunpack.c.h.b16 %v742
        %v889 = vunpack.c.l.b16 %v743
        %v890 = vpack.c.b16 %v812, %v809
        %v891 = vpack.c.b16 %v813, %v810
        %v892 = vpack.c.b16 %v814, %v811
        %v893 = vpack.c.b16 %v818, %v815
        %v894 = vpack.c.b16 %v819, %v816
        %v895 = vpack.c.b16 %v820, %v817
        %v896 = vpack.c.b16 %v824, %v821
        %v897 = vpack.c.b16 %v825, %v822
        %v898 = vpack.c.b16 %v826, %v823
        %v899 = vpack.c.b16 %v830, %v827
        %v900 = vpack.c.b16 %v831, %v828
        %v901 = vpack.c.b16 %v832, %v829
        %v902 = vpack.c.b16 %v836, %v833
        %v903 = vpack.c.b16 %v837, %v834
        %v904 = vpack.c.b16 %v838, %v835
        %v905 = vpack.c.b16 %v842, %v839
        %v906 = vpack.c.b16 %v843, %v840
        %v907 = vpack.c.b16 %v844, %v841
        %v908 = vpack.c.b16 %v848, %v845
        %v909 = vpack.c.b16 %v849, %v846
        %v910 = vpack.c.b16 %v850, %v847
        %v911 = vpack.c.b16 %v854, %v851
        %v912 = vpack.c.b16 %v855, %v852
        %v913 = vpack.c.b16 %v856, %v853
        %v914 = vpack.c.b16 %v860, %v857
        %v915 = vpack.c.b16 %v861, %v858
        %v916 = vpack.c.b16 %v862, %v859
        %v917 = vpack.c.b16 %v866, %v863
        %v918 = vpack.c.b16 %v867, %v864
        %v919 = vpack.c.b16 %v868, %v865
        %v920 = vpack.c.b16 %v872, %v869
        %v921 = vpack.c.b16 %v873, %v870
        %v922 = vpack.c.b16 %v874, %v871
        %v923 = vpack.c.b16 %v878, %v875
        %v924 = vpack.c.b16 %v879, %v876
        %v925 = vpack.c.b16 %v880, %v877
        %v926 = vpack.c.b16 %v884, %v881
        %v927 = vpack.c.b16 %v885, %v882
        %v928 = vpack.c.b16 %v886, %v883
        %v929 = vpack.c.b16 %v887, %v887
        %v930 = vpack.c.b16 %v888, %v888
        %v931 = vpack.c.b16 %v889, %v889
        %vm971 = vcmask 719872
        %v973 = vsel %vm971, %v753, 0
        %vm975 = vcmask 1043456
        %v977 = vsel %vm975, %v929, 0
        %v980 = vsel %vm975, %v930, 0
        %v983 = vsel %vm975, %v931, 0
        %985 = vmatpush.bf16.msra.mxu0 %v911
        %986 = vmatpush.bf16.msra.mxu0 %v908
        %987 = vmatpush.bf16.msra.mxu0 %v905
        %988 = vmatpush.bf16.msra.mxu0 %v902
        %989 = vmatpush.bf16.msra.mxu0 %v899
        %990 = vmatpush.bf16.msra.mxu0 %v896
        %991 = vmatpush.bf16.msra.mxu0 %v893
        %992 = vmatpush.bf16.msra.mxu0 %v890
        %993 = vmatmul.bf16.gmra.mxu0 %v752
        %v994 = vpop.f32.mrf.mxu0
        %v995 = vadd.f32 %v747, %v994
        %v996 = vpop.f32.mrf.mxu0
        %997 = vdwg.mxu0
        %998 = vmatpush.bf16.msra.mxu0 0
        %999 = vmatpush.bf16.msra.mxu0 0
        %1000 = vmatpush.bf16.msra.mxu0 %v977
        %1001 = vmatpush.bf16.msra.mxu0 %v926
        %1002 = vmatpush.bf16.msra.mxu0 %v923
        %1003 = vmatpush.bf16.msra.mxu0 %v920
        %1004 = vmatpush.bf16.msra.mxu0 %v917
        %1005 = vmatpush.bf16.msra.mxu0 %v914
        %1006 = vmatmul.bf16.gmra.mxu0 %v973
        %v1007 = vpop.f32.mrf.mxu0
        %v1008 = vadd.f32 %v995, %v1007
        %v1009 = vpop.f32.mrf.mxu0
        %1010 = vdwg.mxu0
        %1011 = vmatpush.bf16.msra.mxu0 %v912
        %1012 = vmatpush.bf16.msra.mxu0 %v909
        %1013 = vmatpush.bf16.msra.mxu0 %v906
        %1014 = vmatpush.bf16.msra.mxu0 %v903
        %1015 = vmatpush.bf16.msra.mxu0 %v900
        %1016 = vmatpush.bf16.msra.mxu0 %v897
        %1017 = vmatpush.bf16.msra.mxu0 %v894
        %1018 = vmatpush.bf16.msra.mxu0 %v891
        %1019 = vmatmul.bf16.gmra.mxu0 %v752
        %v1020 = vpop.f32.mrf.mxu0
        %v1021 = vadd.f32 %v747, %v1020
        %v1022 = vpop.f32.mrf.mxu0
        %1023 = vdwg.mxu0
        %1024 = vmatpush.bf16.msra.mxu0 0
        %1025 = vmatpush.bf16.msra.mxu0 0
        %1026 = vmatpush.bf16.msra.mxu0 %v980
        %1027 = vmatpush.bf16.msra.mxu0 %v927
        %1028 = vmatpush.bf16.msra.mxu0 %v924
        %1029 = vmatpush.bf16.msra.mxu0 %v921
        %1030 = vmatpush.bf16.msra.mxu0 %v918
        %1031 = vmatpush.bf16.msra.mxu0 %v915
        %1032 = vmatmul.bf16.gmra.mxu0 %v973
        %v1033 = vpop.f32.mrf.mxu0
        %v1034 = vadd.f32 %v1021, %v1033
        %v1035 = vpop.f32.mrf.mxu0
        %1036 = vdwg.mxu0
        %1037 = vmatpush.bf16.msra.mxu0 %v913
        %1038 = vmatpush.bf16.msra.mxu0 %v910
        %1039 = vmatpush.bf16.msra.mxu0 %v907
        %1040 = vmatpush.bf16.msra.mxu0 %v904
        %1041 = vmatpush.bf16.msra.mxu0 %v901
        %1042 = vmatpush.bf16.msra.mxu0 %v898
        %1043 = vmatpush.bf16.msra.mxu0 %v895
        %1044 = vmatpush.bf16.msra.mxu0 %v892
        %1045 = vmatmul.bf16.gmra.mxu0 %v752
        %v1046 = vpop.f32.mrf.mxu0
        %v1047 = vadd.f32 %v747, %v1046
        %v1048 = vpop.f32.mrf.mxu0
        %1049 = vdwg.mxu0
        %1050 = vmatpush.bf16.msra.mxu0 0
        %1051 = vmatpush.bf16.msra.mxu0 0
        %1052 = vmatpush.bf16.msra.mxu0 %v983
        %1053 = vmatpush.bf16.msra.mxu0 %v928
        %1054 = vmatpush.bf16.msra.mxu0 %v925
        %1055 = vmatpush.bf16.msra.mxu0 %v922
        %1056 = vmatpush.bf16.msra.mxu0 %v919
        %1057 = vmatpush.bf16.msra.mxu0 %v916
        %1058 = vmatmul.bf16.gmra.mxu0 %v973
        %v1059 = vpop.f32.mrf.mxu0
        %v1060 = vadd.f32 %v1047, %v1059
        %v1061 = vpop.f32.mrf.mxu0
        %1062 = vdwg.mxu0
        %vm1063 = vcmp.ge.f32.partialorder %v1008, 0.0
        %vm1064 = vcmp.ge.f32.partialorder %v1034, 0.0
        %vm1065 = vcmp.ge.f32.partialorder %v1060, 0.0
        %v1066 = vmul.f32 %v1008, 0.2
        %v1067 = vmul.f32 %v1034, 0.2
        %v1068 = vmul.f32 %v1060, 0.2
        %v1069 = vsel %vm1063, %v1008, %v1066
        %v1070 = vsel %vm1064, %v1034, %v1067
        %v1071 = vsel %vm1065, %v1060, %v1068
        %1072 = vst [vmem:[%s257] sm:$0xff] %v1069
        %1073 = vst [vmem:[%s257 + $0x8] sm:$0xff] %v1070
        %1074 = vst [vmem:[%s257 + $0x10] sm:$0xff] %v1071
        %s1075 = sand.u32 %s126, 1
        %s1076 = scalar_lea.sflag [#allocation5], %s1075
        %s1077 = sand.u32 %s126, 1
        %s1078 = smul.addr %s1077, 24
        %s1079 = scalar_lea.vmem [#allocation8], %s1078
        // Predicated region
        $region45: #{tpu_custom_call.1} parent=35 // pred_check
          %p1080 = pneg %p136
        $region46: #{tpu_custom_call.1} parent=35 // pred_check_branch
          %1082 = sbr.rel (%p1080) target = $region48
        $region47: #{tpu_custom_call.1} parent=35 // pred_region
          %1084 = vsyncadd %s1076, 0
          %s1085 = smul.addr %s24, 3
          %s1086 = smul.addr %s1085, 8
          %s1087 = scalar_lea.hbm %s4, %s1086
          %s1089 = sshll.u32 %s1079, 4
          %s1090 = int_to_ptr.vmem [resolvable:$true] %s1089
          %s1091 = sshll.u32 %s1087, 4
          %s1092 = int_to_ptr.hbm [resolvable:$true] %s1091
          %1094 = dma.vmem_to_hbm [thread:$0]  %s1090, 384, %s1092, %s1076
        $region48: #{tpu_custom_call.1} parent=35 // pred_fallthru
          _
      $region36: #{tpu_custom_call.1} parent=5 // pred_fallthru
        _
      %p1095 = scmp.le.s32.totalorder 2, %s19
      // Predicated region
      $region49: #{tpu_custom_call.1} parent=5 // pred_check
        %p1096 = pneg %p1095
      $region50: #{tpu_custom_call.1} parent=5 // pred_check_branch
        %1098 = sbr.rel (%p1096) target = $region52
      $region51: #{tpu_custom_call.1} parent=5 // pred_region
        %s1099 = ssub.s32 %s19, 2
        // Predicated region
        $region53: #{tpu_custom_call.1} parent=51 // pred_check
          %p1100 = pneg %p142
        $region54: #{tpu_custom_call.1} parent=51 // pred_check_branch
          %1102 = sbr.rel (%p1100) target = $region56
        $region55: #{tpu_custom_call.1} parent=51 // pred_region
          %s1103 = sand.u32 %s127, 1
          %s1104 = scalar_lea.sflag [#allocation5], %s1103
          %s1105 = sand.u32 %s127, 1
          %s1106 = smul.addr %s1105, 24
          %s1107 = scalar_lea.vmem [#allocation8], %s1106
          %1109 = dma.done %s1104, 384
        $region56: #{tpu_custom_call.1} parent=51 // pred_fallthru
          _
      $region52: #{tpu_custom_call.1} parent=5 // pred_fallthru
        _
    $region6: #{tpu_custom_call.1} parent=1 // loop_footer
      %s23 = sadd.s32 1, %s19
    $region7: #{tpu_custom_call.1} parent=1 // loop_footer_branch
      %18 = sbr.rel target = $region3
    $region8: #{tpu_custom_call.1} parent=1 // loop_exit
      _
    %1110 = vsyncpa [#allocation4], 1
    %s1111 = scalar_lea.sflag [#allocation4], 1
    %1112 = vsyncpa %s1111, 1
    %1113 = vsyncpa [#allocation7], 1
    %s1114 = scalar_lea.sflag [#allocation7], 1
    %1115 = vsyncpa %s1114, 1
    %1116 = vsyncpa [#allocation5], 1
    %s1117 = scalar_lea.sflag [#allocation5], 1
    %1118 = vsyncpa %s1117, 1

</llo_original>
